<compile_context>
chip_gen: v5e
topology: v5e:2x2
jax: 0.10.0
libtpu: 0.0.40
codegen_flags: <defaults>
</compile_context>

<pallas_src>
import jax
import jax.numpy as jnp
from jax import lax
from jax.experimental import pallas as pl
from jax.experimental.pallas import tpu as pltpu

HIDDEN = 128        # hidden width of lin1
KAUG = 8            # augmented/padded contraction dim: rows = [x0, x1, 1, 0..0]
CHUNK = 256         # lanes per inner-loop step (keeps hidden act. at 32 vregs)
TB_MAX = 4096       # max batch-lanes per grid step
MIN_GRID = 4        # aim for >= 4 grid steps (v7x megacore sharding)


def _round_up(n, m):
    return ((n + m - 1) // m) * m


def mlp_kernel(xa_ref, w1a_ref, w2p_ref, b2_ref, oT_ref):
    # xa_ref : (KAUG, TB)   rows = [x0, x1, 1, 0, 0, 0, 0, 0], batch on lanes
    # w1a_ref: (128, KAUG)  cols = [W1[:,0], W1[:,1], b1, 0, ...]
    # w2p_ref: (KAUG, 128)  row 0 = w2^T, rows 1..7 = 0
    # b2_ref : (1, 1)       scalar bias, SMEM
    # oT_ref : (1, TB)      lane-dense output row
    tb = xa_ref.shape[1]
    n_chunks = tb // CHUNK                    # static (ref shapes are static)

    # Hoist loop-invariant values out of the chunk loop.
    w1a = w1a_ref[...]                        # (128, KAUG)
    w2p = w2p_ref[...]                        # (KAUG, 128)
    b2 = b2_ref[0, 0]

    def body(c, carry):
        off = pl.multiple_of(c * CHUNK, CHUNK)
        xc = xa_ref[:, pl.ds(off, CHUNK)]     # (KAUG, CHUNK)

        # Layer 1 + bias on the MXU (bias folded in via the ones row of xa).
        h = jnp.dot(w1a, xc,
                    preferred_element_type=jnp.float32,
                    precision=lax.Precision.HIGHEST)          # (128, CHUNK)
        h = jnp.maximum(h, 0.0)                               # ReLU (VPU)

        # Layer 2 on the MXU; rows 1..7 of w2p are zero, row 0 is the result.
        y8 = jnp.dot(w2p, h,
                     preferred_element_type=jnp.float32,
                     precision=lax.Precision.HIGHEST)         # (KAUG, CHUNK)
        oT_ref[:, pl.ds(off, CHUNK)] = y8[0:1, :] + b2
        return carry

    lax.fori_loop(0, n_chunks, body, 0)


def model_b_forward(x, w1, b1, w2, b2):
    """x: (B, 2); w1: (2,128); b1: (128,); w2: (128,1); b2: (1,). Returns (B,1) f32."""
    B = x.shape[0]

    # Tile selection: large tiles to amortize per-grid-step overhead, but keep
    # >= MIN_GRID grid steps when the batch allows (v7x has 2 TensorCores).
    b_chunks = -(-max(B, 1) // CHUNK)                          # ceil(B / CHUNK)
    chunks_per_tile = max(1, min(TB_MAX // CHUNK, -(-b_chunks // MIN_GRID)))
    TB = chunks_per_tile * CHUNK
    B_pad = _round_up(max(B, 1), TB)
    grid = (B_pad // TB,)

    # Wrapper-side layout plumbing: feature-major, bias-augmented input slab.
    # TODO(synk): for very large B the producer should emit x feature-major
    # (2, B) directly so this minor-dim-2 transpose never becomes its own HBM
    # round-trip.
    xT = x.astype(jnp.float32).T                               # (2, B)
    xa = jnp.concatenate([xT, jnp.ones((1, B), jnp.float32)], axis=0)  # (3, B)
    xa = jnp.pad(xa, ((0, KAUG - 3), (0, B_pad - B)))          # (KAUG, B_pad)

    w1a = jnp.concatenate(
        [w1.astype(jnp.float32).T,                             # (128, 2)
         b1.reshape(HIDDEN, 1).astype(jnp.float32),            # (128, 1)
         jnp.zeros((HIDDEN, KAUG - 3), jnp.float32)], axis=1)  # (128, KAUG)
    w2p = jnp.concatenate(
        [w2.reshape(1, HIDDEN).astype(jnp.float32),            # (1, 128)
         jnp.zeros((KAUG - 1, HIDDEN), jnp.float32)], axis=0)  # (KAUG, 128)
    b2k = b2.reshape(1, 1).astype(jnp.float32)

    flops = B * (2 * 2 * HIDDEN + 3 * HIDDEN + 2 * HIDDEN + 1)
    bytes_accessed = B * 3 * 4 + (HIDDEN * KAUG * 2 + 1) * 4

    yT = pl.pallas_call(
        mlp_kernel,
        out_shape=jax.ShapeDtypeStruct((1, B_pad), jnp.float32),
        grid_spec=pl.GridSpec(
            grid=grid,
            in_specs=[
                # batch tile moves with the grid (double-buffered DMA)
                pl.BlockSpec((KAUG, TB), lambda i: (0, i)),
                # weights resident in VMEM across all grid steps
                pl.BlockSpec((HIDDEN, KAUG), lambda i: (0, 0)),
                pl.BlockSpec((KAUG, HIDDEN), lambda i: (0, 0)),
                # scalar bias lives in SMEM
                pl.BlockSpec(memory_space=pltpu.MemorySpace.SMEM),
            ],
            out_specs=pl.BlockSpec((1, TB), lambda i: (0, i)),
        ),
        compiler_params=pltpu.CompilerParams(
            dimension_semantics=("parallel",),   # batch tiles are independent
        ),
        cost_estimate=pl.CostEstimate(
            flops=flops, transcendentals=0, bytes_accessed=bytes_accessed),
    )(xa, w1a, w2p, b2k)

    return yT[0, :B].reshape(B, 1)


def init_params(key):
    """Deterministic init matching nn.Linear shapes: lin1 (2->128), lin2 (128->1)."""
    k1, k2, k3, k4 = jax.random.split(key, 4)
    # PyTorch nn.Linear default init: U(-1/sqrt(fan_in), 1/sqrt(fan_in))
    lim1 = 1.0 / jnp.sqrt(2.0)
    lim2 = 1.0 / jnp.sqrt(128.0)
    w1 = jax.random.uniform(k1, (2, HIDDEN), jnp.float32, -lim1, lim1)   # (in, out)
    b1 = jax.random.uniform(k2, (HIDDEN,), jnp.float32, -lim1, lim1)
    w2 = jax.random.uniform(k3, (HIDDEN, 1), jnp.float32, -lim2, lim2)   # (in, out)
    b2 = jax.random.uniform(k4, (1,), jnp.float32, -lim2, lim2)
    return w1, b1, w2, b2


def _reference(x, w1, b1, w2, b2):
    h = jnp.maximum(
        jnp.dot(x, w1, precision=lax.Precision.HIGHEST) + b1[None, :], 0.0)
    return jnp.dot(h, w2, precision=lax.Precision.HIGHEST) + b2[None, :]


if __name__ == "__main__":
    key = jax.random.PRNGKey(0)
    kx, kp = jax.random.split(key)
    w1, b1, w2, b2 = init_params(kp)

    # Exercise: single-tile grid, multi-tile grid, and the multi-chunk inner loop.
    for B in (8, 1000, 5000):
        xb = jax.random.normal(jax.random.fold_in(kx, B), (B, 2), jnp.float32)
        out = jax.block_until_ready(model_b_forward(xb, w1, b1, w2, b2))
        ref = _reference(xb, w1, b1, w2, b2)
        assert out.shape == (B, 1)
        assert jnp.allclose(out, ref, atol=1e-5, rtol=1e-5), (
            "max abs err: %g" % float(jnp.max(jnp.abs(out - ref))))

    print("KERNEL_OK")
</pallas_src>

<mosaic_0001>
module attributes {stable_mosaic.version = 11 : i64} {
  func.func @mlp_kernel(%arg0: i32, %arg1: memref<8x256xf32, #tpu.memory_space<vmem>>, %arg2: memref<128x8xf32, #tpu.memory_space<vmem>>, %arg3: memref<8x128xf32, #tpu.memory_space<vmem>>, %arg4: memref<1x1xf32, #tpu.memory_space<smem>>, %arg5: memref<1x256xf32, #tpu.memory_space<vmem>>) attributes {dimension_semantics = [#tpu.dimension_semantics<parallel>], iteration_bounds = array<i64: 1>, scalar_prefetch = 0 : i64, scratch_operands = 0 : i64, tpu.core_type = #tpu.core_type<tc>, window_params = [{transform_indices = @transform_0, window_bounds = array<i64: 8, 256>}, {pipeline_mode = #tpu.pipeline_mode<synchronous>, transform_indices = @transform_1, window_bounds = array<i64: 128, 8>}, {pipeline_mode = #tpu.pipeline_mode<synchronous>, transform_indices = @transform_2, window_bounds = array<i64: 8, 128>}, {transform_indices = @transform_3, window_bounds = array<i64: 1, 1>}, {transform_indices = @transform_4, window_bounds = array<i64: 1, 256>}]} {
    %c0 = arith.constant 0 : index
    %c0_0 = arith.constant 0 : index
    %0 = vector.load %arg2[%c0, %c0_0] : memref<128x8xf32, #tpu.memory_space<vmem>>, vector<128x8xf32>
    %c0_1 = arith.constant 0 : index
    %c0_2 = arith.constant 0 : index
    %1 = vector.load %arg3[%c0_1, %c0_2] : memref<8x128xf32, #tpu.memory_space<vmem>>, vector<8x128xf32>
    %c0_3 = arith.constant 0 : index
    %c0_4 = arith.constant 0 : index
    %2 = memref.load %arg4[%c0_3, %c0_4] : memref<1x1xf32, #tpu.memory_space<smem>>
    %c0_i32 = arith.constant 0 : i32
    %c256_i32 = arith.constant 256 : i32
    %3 = arith.muli %c0_i32, %c256_i32 : i32
    %4 = tpu.assume_multiple %3, 256 : i32
    %c0_5 = arith.constant 0 : index
    %5 = arith.index_cast %4 : i32 to index
    %6 = vector.load %arg1[%c0_5, %5] : memref<8x256xf32, #tpu.memory_space<vmem>>, vector<8x256xf32>
    %cst = arith.constant dense<0.000000e+00> : vector<128x256xf32>
    %7 = tpu.matmul %0, %6, %cst {dimension_numbers = #tpu.dot_dimension_numbers<[1], [0], [0], [1], [0, 0, 1, 1], [], []>, precision = #tpu.contract_precision<fp32>} : vector<128x8xf32>, vector<8x256xf32>, vector<128x256xf32> -> vector<128x256xf32>
    %cst_6 = arith.constant 0.000000e+00 : f32
    %8 = vector.broadcast %cst_6 : f32 to vector<128x256xf32>
    %9 = arith.maximumf %7, %8 : vector<128x256xf32>
    %cst_7 = arith.constant dense<0.000000e+00> : vector<8x256xf32>
    %10 = tpu.matmul %1, %9, %cst_7 {dimension_numbers = #tpu.dot_dimension_numbers<[1], [0], [0], [1], [0, 0, 1, 1], [], []>, precision = #tpu.contract_precision<fp32>} : vector<8x128xf32>, vector<128x256xf32>, vector<8x256xf32> -> vector<8x256xf32>
    %11 = vector.extract_strided_slice %10 {offsets = [0, 0], sizes = [1, 256], strides = [1, 1]} : vector<8x256xf32> to vector<1x256xf32>
    %12 = vector.broadcast %2 : f32 to vector<1x256xf32>
    %13 = arith.addf %11, %12 : vector<1x256xf32>
    %c0_8 = arith.constant 0 : index
    %14 = arith.index_cast %4 : i32 to index
    %15 = vector.load %arg5[%c0_8, %14] : memref<1x256xf32, #tpu.memory_space<vmem>>, vector<1x256xf32>
    tpu.vector_store %arg5[%c0_8, %14], %13 {strides = array<i32>} : memref<1x256xf32, #tpu.memory_space<vmem>>, vector<1x256xf32>,
    %c1_i32 = arith.constant 1 : i32
    return
  }
  func.func @transform_0(%arg0: i32) -> (i32, i32) {
    %c0_i32 = arith.constant 0 : i32
    %c0_i32_0 = arith.constant 0 : i32
    return %c0_i32, %arg0 : i32, i32
  }
  func.func @transform_1(%arg0: i32) -> (i32, i32) {
    %c0_i32 = arith.constant 0 : i32
    %c0_i32_0 = arith.constant 0 : i32
    %c0_i32_1 = arith.constant 0 : i32
    return %c0_i32, %c0_i32_0 : i32, i32
  }
  func.func @transform_2(%arg0: i32) -> (i32, i32) {
    %c0_i32 = arith.constant 0 : i32
    %c0_i32_0 = arith.constant 0 : i32
    %c0_i32_1 = arith.constant 0 : i32
    return %c0_i32, %c0_i32_0 : i32, i32
  }
  func.func @transform_3(%arg0: i32) -> (i32, i32) {
    %c0_i32 = arith.constant 0 : i32
    %c0_i32_0 = arith.constant 0 : i32
    %c0_i32_1 = arith.constant 0 : i32
    return %c0_i32, %c0_i32_0 : i32, i32
  }
  func.func @transform_4(%arg0: i32) -> (i32, i32) {
    %c0_i32 = arith.constant 0 : i32
    %c0_i32_0 = arith.constant 0 : i32
    return %c0_i32, %arg0 : i32, i32
  }
}

</mosaic_0001>

<llo_original>
// kernel: tpu_custom_call.1
$region0: #{tpu_custom_call.1}
  #allocation0 [shape = 'u32[]', space=smem, size = 0x4, offset = 0x4, fixed_abs, tag = 'smem constant byte address 0x4 - core index']
  #allocation1 [shape = 'u32[72,128]{1,0:T(1,128)}', space=vmem, size = 0x9000, scoped, tag = 'internal scratch']
  #allocation2 [shape = 'f32[1,1]{1,0:T(1,128)S(6)}', space=smem, size = 0x200, scoped, tag = 'scoped memory for tpu_custom_call.1']
  %s0 = inlined_call_operand.vmem [shape: f32[8,256], index: 0, kind: input, shape index: {}]
  %s1 = inlined_call_operand.vmem [shape: f32[128,8], index: 1, kind: input, shape index: {}]
  %s2 = inlined_call_operand.vmem [shape: f32[8,128], index: 2, kind: input, shape index: {}]
  %s3 = inlined_call_operand.<no memory space> [shape: f32[1,1], index: 3, kind: input, shape index: {}]
  %s4 = inlined_call_operand.hbm [shape: f32[1,256], index: 4, kind: output, shape index: {}]
  %s5 = sld [smem:[#allocation0]]
  $region26: #{tpu_custom_call.1} parent=0
    _
  %s7 = ssub.s32 1, %s5
  %s8 = scalar_select 0, %s7, %s5
  %9 = sst [smem:[#allocation2]] %s3
  $region1: #{tpu_custom_call.1} parent=0
    #allocation3 [shape = 'u8[1024]{0}', space=vmem, size = 0x400, scoped, tag = 'output window, operand 0, single buffered']
    #allocation4 [shape = 's32[1]{0}', space=sflag, size = 0x4, scoped, tag = 'scoped memory for tpu_custom_call.1']
    %10 = vsyncpa [#allocation4], 0
    // Predicated region
    $region2: #{tpu_custom_call.1} parent=1 // pred_check
      _
    $region3: #{tpu_custom_call.1} parent=1 // pred_check_branch
      %12 = sbr.rel (0) target = $region5
    $region4: #{tpu_custom_call.1} parent=1 // pred_region
      _
    $region5: #{tpu_custom_call.1} parent=1 // pred_fallthru
      _
    // Predicated region
    $region6: #{tpu_custom_call.1} parent=1 // pred_check
      _
    $region7: #{tpu_custom_call.1} parent=1 // pred_check_branch
      %14 = sbr.rel (0) target = $region9
    $region8: #{tpu_custom_call.1} parent=1 // pred_region
      _
    $region9: #{tpu_custom_call.1} parent=1 // pred_fallthru
      _
    // Predicated region
    $region10: #{tpu_custom_call.1} parent=1 // pred_check
      _
    $region11: #{tpu_custom_call.1} parent=1 // pred_check_branch
      %16 = sbr.rel (0) target = $region13
    $region12: #{tpu_custom_call.1} parent=1 // pred_region
      _
    $region13: #{tpu_custom_call.1} parent=1 // pred_fallthru
      _
    // Predicated region
    $region14: #{tpu_custom_call.1} parent=1 // pred_check
      _
    $region15: #{tpu_custom_call.1} parent=1 // pred_check_branch
      %18 = sbr.rel (0) target = $region17
    $region16: #{tpu_custom_call.1} parent=1 // pred_region
      _
    $region17: #{tpu_custom_call.1} parent=1 // pred_fallthru
      _
    %v19 = vld [vmem:[%s1] sm:$0xff]
    %v20 = vld [vmem:[%s1 + $0x8] sm:$0xff]
    %v21 = vld [vmem:[%s1 + $0x10] sm:$0xff]
    %v22 = vld [vmem:[%s1 + $0x18] sm:$0xff]
    %v23 = vld [vmem:[%s1 + $0x20] sm:$0xff]
    %v24 = vld [vmem:[%s1 + $0x28] sm:$0xff]
    %v25 = vld [vmem:[%s1 + $0x30] sm:$0xff]
    %v26 = vld [vmem:[%s1 + $0x38] sm:$0xff]
    %v27 = vld [vmem:[%s1 + $0x40] sm:$0xff]
    %v28 = vld [vmem:[%s1 + $0x48] sm:$0xff]
    %v29 = vld [vmem:[%s1 + $0x50] sm:$0xff]
    %v30 = vld [vmem:[%s1 + $0x58] sm:$0xff]
    %v31 = vld [vmem:[%s1 + $0x60] sm:$0xff]
    %v32 = vld [vmem:[%s1 + $0x68] sm:$0xff]
    %v33 = vld [vmem:[%s1 + $0x70] sm:$0xff]
    %v34 = vld [vmem:[%s1 + $0x78] sm:$0xff]
    %v35 = vld [vmem:[%s2] sm:$0xff]
    %s36 = sld [smem:[#allocation2]]
    %v37 = vld [vmem:[%s0] sm:$0xff]
    %v38 = vld [vmem:[%s0 + $0x8] sm:$0xff]
    %vm39 = vcmask 64512
    %v41 = vsel %vm39, %v19, 0
    %v44 = vsel %vm39, %v20, 0
    %v47 = vsel %vm39, %v21, 0
    %v50 = vsel %vm39, %v22, 0
    %v53 = vsel %vm39, %v23, 0
    %v56 = vsel %vm39, %v24, 0
    %v59 = vsel %vm39, %v25, 0
    %v62 = vsel %vm39, %v26, 0
    %v65 = vsel %vm39, %v27, 0
    %v68 = vsel %vm39, %v28, 0
    %v71 = vsel %vm39, %v29, 0
    %v74 = vsel %vm39, %v30, 0
    %v77 = vsel %vm39, %v31, 0
    %v80 = vsel %vm39, %v32, 0
    %v83 = vsel %vm39, %v33, 0
    %v86 = vsel %vm39, %v34, 0
    %88 = vmatpush.msra.mxu0 0.0
    %89 = vmatpush.msra.mxu0 0.0
    %90 = vmatpush.msra.mxu0 0.0
    %91 = vmatpush.msra.mxu0 0.0
    %92 = vmatpush.msra.mxu0 0.0
    %93 = vmatpush.msra.mxu0 0.0
    %94 = vmatpush.msra.mxu0 0.0
    %95 = vmatpush.msra.mxu0 0.0
    %96 = vmatpush.msra.mxu0 0.0
    %97 = vmatpush.msra.mxu0 0.0
    %98 = vmatpush.msra.mxu0 0.0
    %99 = vmatpush.msra.mxu0 0.0
    %100 = vmatpush.msra.mxu0 0.0
    %101 = vmatpush.msra.mxu0 0.0
    %102 = vmatpush.msra.mxu0 0.0
    %v103 = vand.u32 %v37, 4294901760
    %104 = vmatpush.msra.mxu0 %v103
    %v105 = vand.u32 %v41, 4294901760
    %v106 = vsub.f32 %v41, %v105
    %v107 = vand.u32 %v106, 4294901760
    %v108 = vsub.f32 %v106, %v107
    %v109 = vand.u32 %v108, 4294901760
    %110 = vmatmul.f32.gmra.mxu0 %v109
    %v111 = vpop.f32.mrf.mxu0
    %v112 = vadd.f32 0.0, %v111
    %v113 = vand.u32 %v44, 4294901760
    %v114 = vsub.f32 %v44, %v113
    %v115 = vand.u32 %v114, 4294901760
    %v116 = vsub.f32 %v114, %v115
    %v117 = vand.u32 %v116, 4294901760
    %118 = vmatmul.f32.gmra.mxu0 %v117
    %v119 = vpop.f32.mrf.mxu0
    %v120 = vadd.f32 0.0, %v119
    %v121 = vand.u32 %v47, 4294901760
    %v122 = vsub.f32 %v47, %v121
    %v123 = vand.u32 %v122, 4294901760
    %v124 = vsub.f32 %v122, %v123
    %v125 = vand.u32 %v124, 4294901760
    %126 = vmatmul.f32.gmra.mxu0 %v125
    %v127 = vpop.f32.mrf.mxu0
    %v128 = vadd.f32 0.0, %v127
    %v129 = vand.u32 %v50, 4294901760
    %v130 = vsub.f32 %v50, %v129
    %v131 = vand.u32 %v130, 4294901760
    %v132 = vsub.f32 %v130, %v131
    %v133 = vand.u32 %v132, 4294901760
    %134 = vmatmul.f32.gmra.mxu0 %v133
    %v135 = vpop.f32.mrf.mxu0
    %v136 = vadd.f32 0.0, %v135
    %v137 = vand.u32 %v53, 4294901760
    %v138 = vsub.f32 %v53, %v137
    %v139 = vand.u32 %v138, 4294901760
    %v140 = vsub.f32 %v138, %v139
    %v141 = vand.u32 %v140, 4294901760
    %142 = vmatmul.f32.gmra.mxu0 %v141
    %v143 = vpop.f32.mrf.mxu0
    %v144 = vadd.f32 0.0, %v143
    %v145 = vand.u32 %v56, 4294901760
    %v146 = vsub.f32 %v56, %v145
    %v147 = vand.u32 %v146, 4294901760
    %v148 = vsub.f32 %v146, %v147
    %v149 = vand.u32 %v148, 4294901760
    %150 = vmatmul.f32.gmra.mxu0 %v149
    %v151 = vpop.f32.mrf.mxu0
    %v152 = vadd.f32 0.0, %v151
    %v153 = vand.u32 %v59, 4294901760
    %v154 = vsub.f32 %v59, %v153
    %v155 = vand.u32 %v154, 4294901760
    %v156 = vsub.f32 %v154, %v155
    %v157 = vand.u32 %v156, 4294901760
    %158 = vmatmul.f32.gmra.mxu0 %v157
    %v159 = vpop.f32.mrf.mxu0
    %v160 = vadd.f32 0.0, %v159
    %v161 = vand.u32 %v62, 4294901760
    %v162 = vsub.f32 %v62, %v161
    %v163 = vand.u32 %v162, 4294901760
    %v164 = vsub.f32 %v162, %v163
    %v165 = vand.u32 %v164, 4294901760
    %166 = vmatmul.f32.gmra.mxu0 %v165
    %v167 = vpop.f32.mrf.mxu0
    %v168 = vadd.f32 0.0, %v167
    %v169 = vand.u32 %v65, 4294901760
    %v170 = vsub.f32 %v65, %v169
    %v171 = vand.u32 %v170, 4294901760
    %v172 = vsub.f32 %v170, %v171
    %v173 = vand.u32 %v172, 4294901760
    %174 = vmatmul.f32.gmra.mxu0 %v173
    %v175 = vpop.f32.mrf.mxu0
    %v176 = vadd.f32 0.0, %v175
    %v177 = vand.u32 %v68, 4294901760
    %v178 = vsub.f32 %v68, %v177
    %v179 = vand.u32 %v178, 4294901760
    %v180 = vsub.f32 %v178, %v179
    %v181 = vand.u32 %v180, 4294901760
    %182 = vmatmul.f32.gmra.mxu0 %v181
    %v183 = vpop.f32.mrf.mxu0
    %v184 = vadd.f32 0.0, %v183
    %v185 = vand.u32 %v71, 4294901760
    %v186 = vsub.f32 %v71, %v185
    %v187 = vand.u32 %v186, 4294901760
    %v188 = vsub.f32 %v186, %v187
    %v189 = vand.u32 %v188, 4294901760
    %190 = vmatmul.f32.gmra.mxu0 %v189
    %v191 = vpop.f32.mrf.mxu0
    %v192 = vadd.f32 0.0, %v191
    %v193 = vand.u32 %v74, 4294901760
    %v194 = vsub.f32 %v74, %v193
    %v195 = vand.u32 %v194, 4294901760
    %v196 = vsub.f32 %v194, %v195
    %v197 = vand.u32 %v196, 4294901760
    %198 = vmatmul.f32.gmra.mxu0 %v197
    %v199 = vpop.f32.mrf.mxu0
    %v200 = vadd.f32 0.0, %v199
    %v201 = vand.u32 %v77, 4294901760
    %v202 = vsub.f32 %v77, %v201
    %v203 = vand.u32 %v202, 4294901760
    %v204 = vsub.f32 %v202, %v203
    %v205 = vand.u32 %v204, 4294901760
    %206 = vmatmul.f32.gmra.mxu0 %v205
    %v207 = vpop.f32.mrf.mxu0
    %v208 = vadd.f32 0.0, %v207
    %v209 = vand.u32 %v80, 4294901760
    %v210 = vsub.f32 %v80, %v209
    %v211 = vand.u32 %v210, 4294901760
    %v212 = vsub.f32 %v210, %v211
    %v213 = vand.u32 %v212, 4294901760
    %214 = vmatmul.f32.gmra.mxu0 %v213
    %v215 = vpop.f32.mrf.mxu0
    %v216 = vadd.f32 0.0, %v215
    %v217 = vand.u32 %v83, 4294901760
    %v218 = vsub.f32 %v83, %v217
    %v219 = vand.u32 %v218, 4294901760
    %v220 = vsub.f32 %v218, %v219
    %v221 = vand.u32 %v220, 4294901760
    %222 = vmatmul.f32.gmra.mxu0 %v221
    %v223 = vpop.f32.mrf.mxu0
    %v224 = vadd.f32 0.0, %v223
    %v225 = vand.u32 %v86, 4294901760
    %v226 = vsub.f32 %v86, %v225
    %v227 = vand.u32 %v226, 4294901760
    %v228 = vsub.f32 %v226, %v227
    %v229 = vand.u32 %v228, 4294901760
    %230 = vmatmul.f32.gmra.mxu0 %v229
    %v231 = vpop.f32.mrf.mxu0
    %v232 = vadd.f32 0.0, %v231
    %233 = vdwg.mxu0
    %234 = vmatpush.msra.mxu0 0.0
    %235 = vmatpush.msra.mxu0 0.0
    %236 = vmatpush.msra.mxu0 0.0
    %237 = vmatpush.msra.mxu0 0.0
    %238 = vmatpush.msra.mxu0 0.0
    %239 = vmatpush.msra.mxu0 0.0
    %240 = vmatpush.msra.mxu0 0.0
    %241 = vmatpush.msra.mxu0 0.0
    %242 = vmatpush.msra.mxu0 0.0
    %243 = vmatpush.msra.mxu0 0.0
    %244 = vmatpush.msra.mxu0 0.0
    %245 = vmatpush.msra.mxu0 0.0
    %246 = vmatpush.msra.mxu0 0.0
    %247 = vmatpush.msra.mxu0 0.0
    %248 = vmatpush.msra.mxu0 0.0
    %v249 = vand.u32 %v37, 4294901760
    %v250 = vsub.f32 %v37, %v249
    %v251 = vand.u32 %v250, 4294901760
    %v252 = vsub.f32 %v250, %v251
    %v253 = vand.u32 %v252, 4294901760
    %254 = vmatpush.msra.mxu0 %v253
    %v255 = vand.u32 %v41, 4294901760
    %256 = vmatmul.f32.gmra.mxu0 %v255
    %v257 = vpop.f32.mrf.mxu0
    %v258 = vadd.f32 %v112, %v257
    %v259 = vand.u32 %v44, 4294901760
    %260 = vmatmul.f32.gmra.mxu0 %v259
    %v261 = vpop.f32.mrf.mxu0
    %v262 = vadd.f32 %v120, %v261
    %v263 = vand.u32 %v47, 4294901760
    %264 = vmatmul.f32.gmra.mxu0 %v263
    %v265 = vpop.f32.mrf.mxu0
    %v266 = vadd.f32 %v128, %v265
    %v267 = vand.u32 %v50, 4294901760
    %268 = vmatmul.f32.gmra.mxu0 %v267
    %v269 = vpop.f32.mrf.mxu0
    %v270 = vadd.f32 %v136, %v269
    %v271 = vand.u32 %v53, 4294901760
    %272 = vmatmul.f32.gmra.mxu0 %v271
    %v273 = vpop.f32.mrf.mxu0
    %v274 = vadd.f32 %v144, %v273
    %v275 = vand.u32 %v56, 4294901760
    %276 = vmatmul.f32.gmra.mxu0 %v275
    %v277 = vpop.f32.mrf.mxu0
    %v278 = vadd.f32 %v152, %v277
    %v279 = vand.u32 %v59, 4294901760
    %280 = vmatmul.f32.gmra.mxu0 %v279
    %v281 = vpop.f32.mrf.mxu0
    %v282 = vadd.f32 %v160, %v281
    %v283 = vand.u32 %v62, 4294901760
    %284 = vmatmul.f32.gmra.mxu0 %v283
    %v285 = vpop.f32.mrf.mxu0
    %v286 = vadd.f32 %v168, %v285
    %v287 = vand.u32 %v65, 4294901760
    %288 = vmatmul.f32.gmra.mxu0 %v287
    %v289 = vpop.f32.mrf.mxu0
    %v290 = vadd.f32 %v176, %v289
    %v291 = vand.u32 %v68, 4294901760
    %292 = vmatmul.f32.gmra.mxu0 %v291
    %v293 = vpop.f32.mrf.mxu0
    %v294 = vadd.f32 %v184, %v293
    %v295 = vand.u32 %v71, 4294901760
    %296 = vmatmul.f32.gmra.mxu0 %v295
    %v297 = vpop.f32.mrf.mxu0
    %v298 = vadd.f32 %v192, %v297
    %v299 = vand.u32 %v74, 4294901760
    %300 = vmatmul.f32.gmra.mxu0 %v299
    %v301 = vpop.f32.mrf.mxu0
    %v302 = vadd.f32 %v200, %v301
    %v303 = vand.u32 %v77, 4294901760
    %304 = vmatmul.f32.gmra.mxu0 %v303
    %v305 = vpop.f32.mrf.mxu0
    %v306 = vadd.f32 %v208, %v305
    %v307 = vand.u32 %v80, 4294901760
    %308 = vmatmul.f32.gmra.mxu0 %v307
    %v309 = vpop.f32.mrf.mxu0
    %v310 = vadd.f32 %v216, %v309
    %v311 = vand.u32 %v83, 4294901760
    %312 = vmatmul.f32.gmra.mxu0 %v311
    %v313 = vpop.f32.mrf.mxu0
    %v314 = vadd.f32 %v224, %v313
    %v315 = vand.u32 %v86, 4294901760
    %316 = vmatmul.f32.gmra.mxu0 %v315
    %v317 = vpop.f32.mrf.mxu0
    %v318 = vadd.f32 %v232, %v317
    %319 = vdwg.mxu0
    %320 = vmatpush.msra.mxu0 0.0
    %321 = vmatpush.msra.mxu0 0.0
    %322 = vmatpush.msra.mxu0 0.0
    %323 = vmatpush.msra.mxu0 0.0
    %324 = vmatpush.msra.mxu0 0.0
    %325 = vmatpush.msra.mxu0 0.0
    %326 = vmatpush.msra.mxu0 0.0
    %327 = vmatpush.msra.mxu0 0.0
    %328 = vmatpush.msra.mxu0 0.0
    %329 = vmatpush.msra.mxu0 0.0
    %330 = vmatpush.msra.mxu0 0.0
    %331 = vmatpush.msra.mxu0 0.0
    %332 = vmatpush.msra.mxu0 0.0
    %333 = vmatpush.msra.mxu0 0.0
    %334 = vmatpush.msra.mxu0 0.0
    %v335 = vand.u32 %v37, 4294901760
    %v336 = vsub.f32 %v37, %v335
    %337 = vmatpush.msra.mxu0 %v336
    %v338 = vand.u32 %v41, 4294901760
    %v339 = vsub.f32 %v41, %v338
    %340 = vmatmul.f32.gmra.mxu0 %v339
    %v341 = vpop.f32.mrf.mxu0
    %v342 = vadd.f32 %v258, %v341
    %v343 = vand.u32 %v44, 4294901760
    %v344 = vsub.f32 %v44, %v343
    %345 = vmatmul.f32.gmra.mxu0 %v344
    %v346 = vpop.f32.mrf.mxu0
    %v347 = vadd.f32 %v262, %v346
    %v348 = vand.u32 %v47, 4294901760
    %v349 = vsub.f32 %v47, %v348
    %350 = vmatmul.f32.gmra.mxu0 %v349
    %v351 = vpop.f32.mrf.mxu0
    %v352 = vadd.f32 %v266, %v351
    %v353 = vand.u32 %v50, 4294901760
    %v354 = vsub.f32 %v50, %v353
    %355 = vmatmul.f32.gmra.mxu0 %v354
    %v356 = vpop.f32.mrf.mxu0
    %v357 = vadd.f32 %v270, %v356
    %v358 = vand.u32 %v53, 4294901760
    %v359 = vsub.f32 %v53, %v358
    %360 = vmatmul.f32.gmra.mxu0 %v359
    %v361 = vpop.f32.mrf.mxu0
    %v362 = vadd.f32 %v274, %v361
    %v363 = vand.u32 %v56, 4294901760
    %v364 = vsub.f32 %v56, %v363
    %365 = vmatmul.f32.gmra.mxu0 %v364
    %v366 = vpop.f32.mrf.mxu0
    %v367 = vadd.f32 %v278, %v366
    %v368 = vand.u32 %v59, 4294901760
    %v369 = vsub.f32 %v59, %v368
    %370 = vmatmul.f32.gmra.mxu0 %v369
    %v371 = vpop.f32.mrf.mxu0
    %v372 = vadd.f32 %v282, %v371
    %v373 = vand.u32 %v62, 4294901760
    %v374 = vsub.f32 %v62, %v373
    %375 = vmatmul.f32.gmra.mxu0 %v374
    %v376 = vpop.f32.mrf.mxu0
    %v377 = vadd.f32 %v286, %v376
    %v378 = vand.u32 %v65, 4294901760
    %v379 = vsub.f32 %v65, %v378
    %380 = vmatmul.f32.gmra.mxu0 %v379
    %v381 = vpop.f32.mrf.mxu0
    %v382 = vadd.f32 %v290, %v381
    %v383 = vand.u32 %v68, 4294901760
    %v384 = vsub.f32 %v68, %v383
    %385 = vmatmul.f32.gmra.mxu0 %v384
    %v386 = vpop.f32.mrf.mxu0
    %v387 = vadd.f32 %v294, %v386
    %v388 = vand.u32 %v71, 4294901760
    %v389 = vsub.f32 %v71, %v388
    %390 = vmatmul.f32.gmra.mxu0 %v389
    %v391 = vpop.f32.mrf.mxu0
    %v392 = vadd.f32 %v298, %v391
    %v393 = vand.u32 %v74, 4294901760
    %v394 = vsub.f32 %v74, %v393
    %395 = vmatmul.f32.gmra.mxu0 %v394
    %v396 = vpop.f32.mrf.mxu0
    %v397 = vadd.f32 %v302, %v396
    %v398 = vand.u32 %v77, 4294901760
    %v399 = vsub.f32 %v77, %v398
    %400 = vmatmul.f32.gmra.mxu0 %v399
    %v401 = vpop.f32.mrf.mxu0
    %v402 = vadd.f32 %v306, %v401
    %v403 = vand.u32 %v80, 4294901760
    %v404 = vsub.f32 %v80, %v403
    %405 = vmatmul.f32.gmra.mxu0 %v404
    %v406 = vpop.f32.mrf.mxu0
    %v407 = vadd.f32 %v310, %v406
    %v408 = vand.u32 %v83, 4294901760
    %v409 = vsub.f32 %v83, %v408
    %410 = vmatmul.f32.gmra.mxu0 %v409
    %v411 = vpop.f32.mrf.mxu0
    %v412 = vadd.f32 %v314, %v411
    %v413 = vand.u32 %v86, 4294901760
    %v414 = vsub.f32 %v86, %v413
    %415 = vmatmul.f32.gmra.mxu0 %v414
    %v416 = vpop.f32.mrf.mxu0
    %v417 = vadd.f32 %v318, %v416
    %418 = vdwg.mxu0
    %419 = vmatpush.msra.mxu0 0.0
    %420 = vmatpush.msra.mxu0 0.0
    %421 = vmatpush.msra.mxu0 0.0
    %422 = vmatpush.msra.mxu0 0.0
    %423 = vmatpush.msra.mxu0 0.0
    %424 = vmatpush.msra.mxu0 0.0
    %425 = vmatpush.msra.mxu0 0.0
    %426 = vmatpush.msra.mxu0 0.0
    %427 = vmatpush.msra.mxu0 0.0
    %428 = vmatpush.msra.mxu0 0.0
    %429 = vmatpush.msra.mxu0 0.0
    %430 = vmatpush.msra.mxu0 0.0
    %431 = vmatpush.msra.mxu0 0.0
    %432 = vmatpush.msra.mxu0 0.0
    %433 = vmatpush.msra.mxu0 0.0
    %v434 = vand.u32 %v37, 4294901760
    %435 = vmatpush.msra.mxu0 %v434
    %v436 = vand.u32 %v41, 4294901760
    %v437 = vsub.f32 %v41, %v436
    %v438 = vand.u32 %v437, 4294901760
    %439 = vmatmul.f32.gmra.mxu0 %v438
    %v440 = vpop.f32.mrf.mxu0
    %v441 = vadd.f32 %v342, %v440
    %v442 = vand.u32 %v44, 4294901760
    %v443 = vsub.f32 %v44, %v442
    %v444 = vand.u32 %v443, 4294901760
    %445 = vmatmul.f32.gmra.mxu0 %v444
    %v446 = vpop.f32.mrf.mxu0
    %v447 = vadd.f32 %v347, %v446
    %v448 = vand.u32 %v47, 4294901760
    %v449 = vsub.f32 %v47, %v448
    %v450 = vand.u32 %v449, 4294901760
    %451 = vmatmul.f32.gmra.mxu0 %v450
    %v452 = vpop.f32.mrf.mxu0
    %v453 = vadd.f32 %v352, %v452
    %v454 = vand.u32 %v50, 4294901760
    %v455 = vsub.f32 %v50, %v454
    %v456 = vand.u32 %v455, 4294901760
    %457 = vmatmul.f32.gmra.mxu0 %v456
    %v458 = vpop.f32.mrf.mxu0
    %v459 = vadd.f32 %v357, %v458
    %v460 = vand.u32 %v53, 4294901760
    %v461 = vsub.f32 %v53, %v460
    %v462 = vand.u32 %v461, 4294901760
    %463 = vmatmul.f32.gmra.mxu0 %v462
    %v464 = vpop.f32.mrf.mxu0
    %v465 = vadd.f32 %v362, %v464
    %v466 = vand.u32 %v56, 4294901760
    %v467 = vsub.f32 %v56, %v466
    %v468 = vand.u32 %v467, 4294901760
    %469 = vmatmul.f32.gmra.mxu0 %v468
    %v470 = vpop.f32.mrf.mxu0
    %v471 = vadd.f32 %v367, %v470
    %v472 = vand.u32 %v59, 4294901760
    %v473 = vsub.f32 %v59, %v472
    %v474 = vand.u32 %v473, 4294901760
    %475 = vmatmul.f32.gmra.mxu0 %v474
    %v476 = vpop.f32.mrf.mxu0
    %v477 = vadd.f32 %v372, %v476
    %v478 = vand.u32 %v62, 4294901760
    %v479 = vsub.f32 %v62, %v478
    %v480 = vand.u32 %v479, 4294901760
    %481 = vmatmul.f32.gmra.mxu0 %v480
    %v482 = vpop.f32.mrf.mxu0
    %v483 = vadd.f32 %v377, %v482
    %v484 = vand.u32 %v65, 4294901760
    %v485 = vsub.f32 %v65, %v484
    %v486 = vand.u32 %v485, 4294901760
    %487 = vmatmul.f32.gmra.mxu0 %v486
    %v488 = vpop.f32.mrf.mxu0
    %v489 = vadd.f32 %v382, %v488
    %v490 = vand.u32 %v68, 4294901760
    %v491 = vsub.f32 %v68, %v490
    %v492 = vand.u32 %v491, 4294901760
    %493 = vmatmul.f32.gmra.mxu0 %v492
    %v494 = vpop.f32.mrf.mxu0
    %v495 = vadd.f32 %v387, %v494
    %v496 = vand.u32 %v71, 4294901760
    %v497 = vsub.f32 %v71, %v496
    %v498 = vand.u32 %v497, 4294901760
    %499 = vmatmul.f32.gmra.mxu0 %v498
    %v500 = vpop.f32.mrf.mxu0
    %v501 = vadd.f32 %v392, %v500
    %v502 = vand.u32 %v74, 4294901760
    %v503 = vsub.f32 %v74, %v502
    %v504 = vand.u32 %v503, 4294901760
    %505 = vmatmul.f32.gmra.mxu0 %v504
    %v506 = vpop.f32.mrf.mxu0
    %v507 = vadd.f32 %v397, %v506
    %v508 = vand.u32 %v77, 4294901760
    %v509 = vsub.f32 %v77, %v508
    %v510 = vand.u32 %v509, 4294901760
    %511 = vmatmul.f32.gmra.mxu0 %v510
    %v512 = vpop.f32.mrf.mxu0
    %v513 = vadd.f32 %v402, %v512
    %v514 = vand.u32 %v80, 4294901760
    %v515 = vsub.f32 %v80, %v514
    %v516 = vand.u32 %v515, 4294901760
    %517 = vmatmul.f32.gmra.mxu0 %v516
    %v518 = vpop.f32.mrf.mxu0
    %v519 = vadd.f32 %v407, %v518
    %v520 = vand.u32 %v83, 4294901760
    %v521 = vsub.f32 %v83, %v520
    %v522 = vand.u32 %v521, 4294901760
    %523 = vmatmul.f32.gmra.mxu0 %v522
    %v524 = vpop.f32.mrf.mxu0
    %v525 = vadd.f32 %v412, %v524
    %v526 = vand.u32 %v86, 4294901760
    %v527 = vsub.f32 %v86, %v526
    %v528 = vand.u32 %v527, 4294901760
    %529 = vmatmul.f32.gmra.mxu0 %v528
    %v530 = vpop.f32.mrf.mxu0
    %v531 = vadd.f32 %v417, %v530
    %532 = vdwg.mxu0
    %533 = vmatpush.msra.mxu0 0.0
    %534 = vmatpush.msra.mxu0 0.0
    %535 = vmatpush.msra.mxu0 0.0
    %536 = vmatpush.msra.mxu0 0.0
    %537 = vmatpush.msra.mxu0 0.0
    %538 = vmatpush.msra.mxu0 0.0
    %539 = vmatpush.msra.mxu0 0.0
    %540 = vmatpush.msra.mxu0 0.0
    %541 = vmatpush.msra.mxu0 0.0
    %542 = vmatpush.msra.mxu0 0.0
    %543 = vmatpush.msra.mxu0 0.0
    %544 = vmatpush.msra.mxu0 0.0
    %545 = vmatpush.msra.mxu0 0.0
    %546 = vmatpush.msra.mxu0 0.0
    %547 = vmatpush.msra.mxu0 0.0
    %v548 = vand.u32 %v37, 4294901760
    %v549 = vsub.f32 %v37, %v548
    %v550 = vand.u32 %v549, 4294901760
    %551 = vmatpush.msra.mxu0 %v550
    %v552 = vand.u32 %v41, 4294901760
    %553 = vmatmul.f32.gmra.mxu0 %v552
    %v554 = vpop.f32.mrf.mxu0
    %v555 = vadd.f32 %v441, %v554
    %v556 = vand.u32 %v44, 4294901760
    %557 = vmatmul.f32.gmra.mxu0 %v556
    %v558 = vpop.f32.mrf.mxu0
    %v559 = vadd.f32 %v447, %v558
    %v560 = vand.u32 %v47, 4294901760
    %561 = vmatmul.f32.gmra.mxu0 %v560
    %v562 = vpop.f32.mrf.mxu0
    %v563 = vadd.f32 %v453, %v562
    %v564 = vand.u32 %v50, 4294901760
    %565 = vmatmul.f32.gmra.mxu0 %v564
    %v566 = vpop.f32.mrf.mxu0
    %v567 = vadd.f32 %v459, %v566
    %v568 = vand.u32 %v53, 4294901760
    %569 = vmatmul.f32.gmra.mxu0 %v568
    %v570 = vpop.f32.mrf.mxu0
    %v571 = vadd.f32 %v465, %v570
    %v572 = vand.u32 %v56, 4294901760
    %573 = vmatmul.f32.gmra.mxu0 %v572
    %v574 = vpop.f32.mrf.mxu0
    %v575 = vadd.f32 %v471, %v574
    %v576 = vand.u32 %v59, 4294901760
    %577 = vmatmul.f32.gmra.mxu0 %v576
    %v578 = vpop.f32.mrf.mxu0
    %v579 = vadd.f32 %v477, %v578
    %v580 = vand.u32 %v62, 4294901760
    %581 = vmatmul.f32.gmra.mxu0 %v580
    %v582 = vpop.f32.mrf.mxu0
    %v583 = vadd.f32 %v483, %v582
    %v584 = vand.u32 %v65, 4294901760
    %585 = vmatmul.f32.gmra.mxu0 %v584
    %v586 = vpop.f32.mrf.mxu0
    %v587 = vadd.f32 %v489, %v586
    %v588 = vand.u32 %v68, 4294901760
    %589 = vmatmul.f32.gmra.mxu0 %v588
    %v590 = vpop.f32.mrf.mxu0
    %v591 = vadd.f32 %v495, %v590
    %v592 = vand.u32 %v71, 4294901760
    %593 = vmatmul.f32.gmra.mxu0 %v592
    %v594 = vpop.f32.mrf.mxu0
    %v595 = vadd.f32 %v501, %v594
    %v596 = vand.u32 %v74, 4294901760
    %597 = vmatmul.f32.gmra.mxu0 %v596
    %v598 = vpop.f32.mrf.mxu0
    %v599 = vadd.f32 %v507, %v598
    %v600 = vand.u32 %v77, 4294901760
    %601 = vmatmul.f32.gmra.mxu0 %v600
    %v602 = vpop.f32.mrf.mxu0
    %v603 = vadd.f32 %v513, %v602
    %v604 = vand.u32 %v80, 4294901760
    %605 = vmatmul.f32.gmra.mxu0 %v604
    %v606 = vpop.f32.mrf.mxu0
    %v607 = vadd.f32 %v519, %v606
    %v608 = vand.u32 %v83, 4294901760
    %609 = vmatmul.f32.gmra.mxu0 %v608
    %v610 = vpop.f32.mrf.mxu0
    %v611 = vadd.f32 %v525, %v610
    %v612 = vand.u32 %v86, 4294901760
    %613 = vmatmul.f32.gmra.mxu0 %v612
    %v614 = vpop.f32.mrf.mxu0
    %v615 = vadd.f32 %v531, %v614
    %616 = vdwg.mxu0
    %617 = vmatpush.msra.mxu0 0.0
    %618 = vmatpush.msra.mxu0 0.0
    %619 = vmatpush.msra.mxu0 0.0
    %620 = vmatpush.msra.mxu0 0.0
    %621 = vmatpush.msra.mxu0 0.0
    %622 = vmatpush.msra.mxu0 0.0
    %623 = vmatpush.msra.mxu0 0.0
    %624 = vmatpush.msra.mxu0 0.0
    %625 = vmatpush.msra.mxu0 0.0
    %626 = vmatpush.msra.mxu0 0.0
    %627 = vmatpush.msra.mxu0 0.0
    %628 = vmatpush.msra.mxu0 0.0
    %629 = vmatpush.msra.mxu0 0.0
    %630 = vmatpush.msra.mxu0 0.0
    %631 = vmatpush.msra.mxu0 0.0
    %v632 = vand.u32 %v37, 4294901760
    %633 = vmatpush.msra.mxu0 %v632
    %v634 = vand.u32 %v41, 4294901760
    %635 = vmatmul.f32.gmra.mxu0 %v634
    %v636 = vpop.f32.mrf.mxu0
    %v637 = vadd.f32 %v555, %v636
    %v638 = vand.u32 %v44, 4294901760
    %639 = vmatmul.f32.gmra.mxu0 %v638
    %v640 = vpop.f32.mrf.mxu0
    %v641 = vadd.f32 %v559, %v640
    %v642 = vand.u32 %v47, 4294901760
    %643 = vmatmul.f32.gmra.mxu0 %v642
    %v644 = vpop.f32.mrf.mxu0
    %v645 = vadd.f32 %v563, %v644
    %v646 = vand.u32 %v50, 4294901760
    %647 = vmatmul.f32.gmra.mxu0 %v646
    %v648 = vpop.f32.mrf.mxu0
    %v649 = vadd.f32 %v567, %v648
    %v650 = vand.u32 %v53, 4294901760
    %651 = vmatmul.f32.gmra.mxu0 %v650
    %v652 = vpop.f32.mrf.mxu0
    %v653 = vadd.f32 %v571, %v652
    %v654 = vand.u32 %v56, 4294901760
    %655 = vmatmul.f32.gmra.mxu0 %v654
    %v656 = vpop.f32.mrf.mxu0
    %v657 = vadd.f32 %v575, %v656
    %v658 = vand.u32 %v59, 4294901760
    %659 = vmatmul.f32.gmra.mxu0 %v658
    %v660 = vpop.f32.mrf.mxu0
    %v661 = vadd.f32 %v579, %v660
    %v662 = vand.u32 %v62, 4294901760
    %663 = vmatmul.f32.gmra.mxu0 %v662
    %v664 = vpop.f32.mrf.mxu0
    %v665 = vadd.f32 %v583, %v664
    %v666 = vand.u32 %v65, 4294901760
    %667 = vmatmul.f32.gmra.mxu0 %v666
    %v668 = vpop.f32.mrf.mxu0
    %v669 = vadd.f32 %v587, %v668
    %v670 = vand.u32 %v68, 4294901760
    %671 = vmatmul.f32.gmra.mxu0 %v670
    %v672 = vpop.f32.mrf.mxu0
    %v673 = vadd.f32 %v591, %v672
    %v674 = vand.u32 %v71, 4294901760
    %675 = vmatmul.f32.gmra.mxu0 %v674
    %v676 = vpop.f32.mrf.mxu0
    %v677 = vadd.f32 %v595, %v676
    %v678 = vand.u32 %v74, 4294901760
    %679 = vmatmul.f32.gmra.mxu0 %v678
    %v680 = vpop.f32.mrf.mxu0
    %v681 = vadd.f32 %v599, %v680
    %v682 = vand.u32 %v77, 4294901760
    %683 = vmatmul.f32.gmra.mxu0 %v682
    %v684 = vpop.f32.mrf.mxu0
    %v685 = vadd.f32 %v603, %v684
    %v686 = vand.u32 %v80, 4294901760
    %687 = vmatmul.f32.gmra.mxu0 %v686
    %v688 = vpop.f32.mrf.mxu0
    %v689 = vadd.f32 %v607, %v688
    %v690 = vand.u32 %v83, 4294901760
    %691 = vmatmul.f32.gmra.mxu0 %v690
    %v692 = vpop.f32.mrf.mxu0
    %v693 = vadd.f32 %v611, %v692
    %v694 = vand.u32 %v86, 4294901760
    %695 = vmatmul.f32.gmra.mxu0 %v694
    %v696 = vpop.f32.mrf.mxu0
    %v697 = vadd.f32 %v615, %v696
    %698 = vdwg.mxu0
    %699 = vmatpush.msra.mxu0 0.0
    %700 = vmatpush.msra.mxu0 0.0
    %701 = vmatpush.msra.mxu0 0.0
    %702 = vmatpush.msra.mxu0 0.0
    %703 = vmatpush.msra.mxu0 0.0
    %704 = vmatpush.msra.mxu0 0.0
    %705 = vmatpush.msra.mxu0 0.0
    %706 = vmatpush.msra.mxu0 0.0
    %707 = vmatpush.msra.mxu0 0.0
    %708 = vmatpush.msra.mxu0 0.0
    %709 = vmatpush.msra.mxu0 0.0
    %710 = vmatpush.msra.mxu0 0.0
    %711 = vmatpush.msra.mxu0 0.0
    %712 = vmatpush.msra.mxu0 0.0
    %713 = vmatpush.msra.mxu0 0.0
    %v714 = vand.u32 %v38, 4294901760
    %715 = vmatpush.msra.mxu0 %v714
    %v716 = vand.u32 %v41, 4294901760
    %v717 = vsub.f32 %v41, %v716
    %v718 = vand.u32 %v717, 4294901760
    %v719 = vsub.f32 %v717, %v718
    %v720 = vand.u32 %v719, 4294901760
    %721 = vmatmul.f32.gmra.mxu0 %v720
    %v722 = vpop.f32.mrf.mxu0
    %v723 = vadd.f32 0.0, %v722
    %v724 = vand.u32 %v44, 4294901760
    %v725 = vsub.f32 %v44, %v724
    %v726 = vand.u32 %v725, 4294901760
    %v727 = vsub.f32 %v725, %v726
    %v728 = vand.u32 %v727, 4294901760
    %729 = vmatmul.f32.gmra.mxu0 %v728
    %v730 = vpop.f32.mrf.mxu0
    %v731 = vadd.f32 0.0, %v730
    %v732 = vand.u32 %v47, 4294901760
    %v733 = vsub.f32 %v47, %v732
    %v734 = vand.u32 %v733, 4294901760
    %v735 = vsub.f32 %v733, %v734
    %v736 = vand.u32 %v735, 4294901760
    %737 = vmatmul.f32.gmra.mxu0 %v736
    %v738 = vpop.f32.mrf.mxu0
    %v739 = vadd.f32 0.0, %v738
    %v740 = vand.u32 %v50, 4294901760
    %v741 = vsub.f32 %v50, %v740
    %v742 = vand.u32 %v741, 4294901760
    %v743 = vsub.f32 %v741, %v742
    %v744 = vand.u32 %v743, 4294901760
    %745 = vmatmul.f32.gmra.mxu0 %v744
    %v746 = vpop.f32.mrf.mxu0
    %v747 = vadd.f32 0.0, %v746
    %v748 = vand.u32 %v53, 4294901760
    %v749 = vsub.f32 %v53, %v748
    %v750 = vand.u32 %v749, 4294901760
    %v751 = vsub.f32 %v749, %v750
    %v752 = vand.u32 %v751, 4294901760
    %753 = vmatmul.f32.gmra.mxu0 %v752
    %v754 = vpop.f32.mrf.mxu0
    %v755 = vadd.f32 0.0, %v754
    %v756 = vand.u32 %v56, 4294901760
    %v757 = vsub.f32 %v56, %v756
    %v758 = vand.u32 %v757, 4294901760
    %v759 = vsub.f32 %v757, %v758
    %v760 = vand.u32 %v759, 4294901760
    %761 = vmatmul.f32.gmra.mxu0 %v760
    %v762 = vpop.f32.mrf.mxu0
    %v763 = vadd.f32 0.0, %v762
    %v764 = vand.u32 %v59, 4294901760
    %v765 = vsub.f32 %v59, %v764
    %v766 = vand.u32 %v765, 4294901760
    %v767 = vsub.f32 %v765, %v766
    %v768 = vand.u32 %v767, 4294901760
    %769 = vmatmul.f32.gmra.mxu0 %v768
    %v770 = vpop.f32.mrf.mxu0
    %v771 = vadd.f32 0.0, %v770
    %v772 = vand.u32 %v62, 4294901760
    %v773 = vsub.f32 %v62, %v772
    %v774 = vand.u32 %v773, 4294901760
    %v775 = vsub.f32 %v773, %v774
    %v776 = vand.u32 %v775, 4294901760
    %777 = vmatmul.f32.gmra.mxu0 %v776
    %v778 = vpop.f32.mrf.mxu0
    %v779 = vadd.f32 0.0, %v778
    %v780 = vand.u32 %v65, 4294901760
    %v781 = vsub.f32 %v65, %v780
    %v782 = vand.u32 %v781, 4294901760
    %v783 = vsub.f32 %v781, %v782
    %v784 = vand.u32 %v783, 4294901760
    %785 = vmatmul.f32.gmra.mxu0 %v784
    %v786 = vpop.f32.mrf.mxu0
    %v787 = vadd.f32 0.0, %v786
    %v788 = vand.u32 %v68, 4294901760
    %v789 = vsub.f32 %v68, %v788
    %v790 = vand.u32 %v789, 4294901760
    %v791 = vsub.f32 %v789, %v790
    %v792 = vand.u32 %v791, 4294901760
    %793 = vmatmul.f32.gmra.mxu0 %v792
    %v794 = vpop.f32.mrf.mxu0
    %v795 = vadd.f32 0.0, %v794
    %v796 = vand.u32 %v71, 4294901760
    %v797 = vsub.f32 %v71, %v796
    %v798 = vand.u32 %v797, 4294901760
    %v799 = vsub.f32 %v797, %v798
    %v800 = vand.u32 %v799, 4294901760
    %801 = vmatmul.f32.gmra.mxu0 %v800
    %v802 = vpop.f32.mrf.mxu0
    %v803 = vadd.f32 0.0, %v802
    %v804 = vand.u32 %v74, 4294901760
    %v805 = vsub.f32 %v74, %v804
    %v806 = vand.u32 %v805, 4294901760
    %v807 = vsub.f32 %v805, %v806
    %v808 = vand.u32 %v807, 4294901760
    %809 = vmatmul.f32.gmra.mxu0 %v808
    %v810 = vpop.f32.mrf.mxu0
    %v811 = vadd.f32 0.0, %v810
    %v812 = vand.u32 %v77, 4294901760
    %v813 = vsub.f32 %v77, %v812
    %v814 = vand.u32 %v813, 4294901760
    %v815 = vsub.f32 %v813, %v814
    %v816 = vand.u32 %v815, 4294901760
    %817 = vmatmul.f32.gmra.mxu0 %v816
    %v818 = vpop.f32.mrf.mxu0
    %v819 = vadd.f32 0.0, %v818
    %v820 = vand.u32 %v80, 4294901760
    %v821 = vsub.f32 %v80, %v820
    %v822 = vand.u32 %v821, 4294901760
    %v823 = vsub.f32 %v821, %v822
    %v824 = vand.u32 %v823, 4294901760
    %825 = vmatmul.f32.gmra.mxu0 %v824
    %v826 = vpop.f32.mrf.mxu0
    %v827 = vadd.f32 0.0, %v826
    %v828 = vand.u32 %v83, 4294901760
    %v829 = vsub.f32 %v83, %v828
    %v830 = vand.u32 %v829, 4294901760
    %v831 = vsub.f32 %v829, %v830
    %v832 = vand.u32 %v831, 4294901760
    %833 = vmatmul.f32.gmra.mxu0 %v832
    %v834 = vpop.f32.mrf.mxu0
    %v835 = vadd.f32 0.0, %v834
    %v836 = vand.u32 %v86, 4294901760
    %v837 = vsub.f32 %v86, %v836
    %v838 = vand.u32 %v837, 4294901760
    %v839 = vsub.f32 %v837, %v838
    %v840 = vand.u32 %v839, 4294901760
    %841 = vmatmul.f32.gmra.mxu0 %v840
    %v842 = vpop.f32.mrf.mxu0
    %v843 = vadd.f32 0.0, %v842
    %844 = vdwg.mxu0
    %845 = vmatpush.msra.mxu0 0.0
    %846 = vmatpush.msra.mxu0 0.0
    %847 = vmatpush.msra.mxu0 0.0
    %848 = vmatpush.msra.mxu0 0.0
    %849 = vmatpush.msra.mxu0 0.0
    %850 = vmatpush.msra.mxu0 0.0
    %851 = vmatpush.msra.mxu0 0.0
    %852 = vmatpush.msra.mxu0 0.0
    %853 = vmatpush.msra.mxu0 0.0
    %854 = vmatpush.msra.mxu0 0.0
    %855 = vmatpush.msra.mxu0 0.0
    %856 = vmatpush.msra.mxu0 0.0
    %857 = vmatpush.msra.mxu0 0.0
    %858 = vmatpush.msra.mxu0 0.0
    %859 = vmatpush.msra.mxu0 0.0
    %v860 = vand.u32 %v38, 4294901760
    %v861 = vsub.f32 %v38, %v860
    %v862 = vand.u32 %v861, 4294901760
    %v863 = vsub.f32 %v861, %v862
    %v864 = vand.u32 %v863, 4294901760
    %865 = vmatpush.msra.mxu0 %v864
    %v866 = vand.u32 %v41, 4294901760
    %867 = vmatmul.f32.gmra.mxu0 %v866
    %v868 = vpop.f32.mrf.mxu0
    %v869 = vadd.f32 %v723, %v868
    %v870 = vand.u32 %v44, 4294901760
    %871 = vmatmul.f32.gmra.mxu0 %v870
    %v872 = vpop.f32.mrf.mxu0
    %v873 = vadd.f32 %v731, %v872
    %v874 = vand.u32 %v47, 4294901760
    %875 = vmatmul.f32.gmra.mxu0 %v874
    %v876 = vpop.f32.mrf.mxu0
    %v877 = vadd.f32 %v739, %v876
    %v878 = vand.u32 %v50, 4294901760
    %879 = vmatmul.f32.gmra.mxu0 %v878
    %v880 = vpop.f32.mrf.mxu0
    %v881 = vadd.f32 %v747, %v880
    %v882 = vand.u32 %v53, 4294901760
    %883 = vmatmul.f32.gmra.mxu0 %v882
    %v884 = vpop.f32.mrf.mxu0
    %v885 = vadd.f32 %v755, %v884
    %v886 = vand.u32 %v56, 4294901760
    %887 = vmatmul.f32.gmra.mxu0 %v886
    %v888 = vpop.f32.mrf.mxu0
    %v889 = vadd.f32 %v763, %v888
    %v890 = vand.u32 %v59, 4294901760
    %891 = vmatmul.f32.gmra.mxu0 %v890
    %v892 = vpop.f32.mrf.mxu0
    %v893 = vadd.f32 %v771, %v892
    %v894 = vand.u32 %v62, 4294901760
    %895 = vmatmul.f32.gmra.mxu0 %v894
    %v896 = vpop.f32.mrf.mxu0
    %v897 = vadd.f32 %v779, %v896
    %v898 = vand.u32 %v65, 4294901760
    %899 = vmatmul.f32.gmra.mxu0 %v898
    %v900 = vpop.f32.mrf.mxu0
    %v901 = vadd.f32 %v787, %v900
    %v902 = vand.u32 %v68, 4294901760
    %903 = vmatmul.f32.gmra.mxu0 %v902
    %v904 = vpop.f32.mrf.mxu0
    %v905 = vadd.f32 %v795, %v904
    %v906 = vand.u32 %v71, 4294901760
    %907 = vmatmul.f32.gmra.mxu0 %v906
    %v908 = vpop.f32.mrf.mxu0
    %v909 = vadd.f32 %v803, %v908
    %v910 = vand.u32 %v74, 4294901760
    %911 = vmatmul.f32.gmra.mxu0 %v910
    %v912 = vpop.f32.mrf.mxu0
    %v913 = vadd.f32 %v811, %v912
    %v914 = vand.u32 %v77, 4294901760
    %915 = vmatmul.f32.gmra.mxu0 %v914
    %v916 = vpop.f32.mrf.mxu0
    %v917 = vadd.f32 %v819, %v916
    %v918 = vand.u32 %v80, 4294901760
    %919 = vmatmul.f32.gmra.mxu0 %v918
    %v920 = vpop.f32.mrf.mxu0
    %v921 = vadd.f32 %v827, %v920
    %v922 = vand.u32 %v83, 4294901760
    %923 = vmatmul.f32.gmra.mxu0 %v922
    %v924 = vpop.f32.mrf.mxu0
    %v925 = vadd.f32 %v835, %v924
    %v926 = vand.u32 %v86, 4294901760
    %927 = vmatmul.f32.gmra.mxu0 %v926
    %v928 = vpop.f32.mrf.mxu0
    %v929 = vadd.f32 %v843, %v928
    %930 = vdwg.mxu0
    %931 = vmatpush.msra.mxu0 0.0
    %932 = vmatpush.msra.mxu0 0.0
    %933 = vmatpush.msra.mxu0 0.0
    %934 = vmatpush.msra.mxu0 0.0
    %935 = vmatpush.msra.mxu0 0.0
    %936 = vmatpush.msra.mxu0 0.0
    %937 = vmatpush.msra.mxu0 0.0
    %938 = vmatpush.msra.mxu0 0.0
    %939 = vmatpush.msra.mxu0 0.0
    %940 = vmatpush.msra.mxu0 0.0
    %941 = vmatpush.msra.mxu0 0.0
    %942 = vmatpush.msra.mxu0 0.0
    %943 = vmatpush.msra.mxu0 0.0
    %944 = vmatpush.msra.mxu0 0.0
    %945 = vmatpush.msra.mxu0 0.0
    %v946 = vand.u32 %v38, 4294901760
    %v947 = vsub.f32 %v38, %v946
    %948 = vmatpush.msra.mxu0 %v947
    %v949 = vand.u32 %v41, 4294901760
    %v950 = vsub.f32 %v41, %v949
    %951 = vmatmul.f32.gmra.mxu0 %v950
    %v952 = vpop.f32.mrf.mxu0
    %v953 = vadd.f32 %v869, %v952
    %v954 = vand.u32 %v44, 4294901760
    %v955 = vsub.f32 %v44, %v954
    %956 = vmatmul.f32.gmra.mxu0 %v955
    %v957 = vpop.f32.mrf.mxu0
    %v958 = vadd.f32 %v873, %v957
    %v959 = vand.u32 %v47, 4294901760
    %v960 = vsub.f32 %v47, %v959
    %961 = vmatmul.f32.gmra.mxu0 %v960
    %v962 = vpop.f32.mrf.mxu0
    %v963 = vadd.f32 %v877, %v962
    %v964 = vand.u32 %v50, 4294901760
    %v965 = vsub.f32 %v50, %v964
    %966 = vmatmul.f32.gmra.mxu0 %v965
    %v967 = vpop.f32.mrf.mxu0
    %v968 = vadd.f32 %v881, %v967
    %v969 = vand.u32 %v53, 4294901760
    %v970 = vsub.f32 %v53, %v969
    %971 = vmatmul.f32.gmra.mxu0 %v970
    %v972 = vpop.f32.mrf.mxu0
    %v973 = vadd.f32 %v885, %v972
    %v974 = vand.u32 %v56, 4294901760
    %v975 = vsub.f32 %v56, %v974
    %976 = vmatmul.f32.gmra.mxu0 %v975
    %v977 = vpop.f32.mrf.mxu0
    %v978 = vadd.f32 %v889, %v977
    %v979 = vand.u32 %v59, 4294901760
    %v980 = vsub.f32 %v59, %v979
    %981 = vmatmul.f32.gmra.mxu0 %v980
    %v982 = vpop.f32.mrf.mxu0
    %v983 = vadd.f32 %v893, %v982
    %v984 = vand.u32 %v62, 4294901760
    %v985 = vsub.f32 %v62, %v984
    %986 = vmatmul.f32.gmra.mxu0 %v985
    %v987 = vpop.f32.mrf.mxu0
    %v988 = vadd.f32 %v897, %v987
    %v989 = vand.u32 %v65, 4294901760
    %v990 = vsub.f32 %v65, %v989
    %991 = vmatmul.f32.gmra.mxu0 %v990
    %v992 = vpop.f32.mrf.mxu0
    %v993 = vadd.f32 %v901, %v992
    %v994 = vand.u32 %v68, 4294901760
    %v995 = vsub.f32 %v68, %v994
    %996 = vmatmul.f32.gmra.mxu0 %v995
    %v997 = vpop.f32.mrf.mxu0
    %v998 = vadd.f32 %v905, %v997
    %v999 = vand.u32 %v71, 4294901760
    %v1000 = vsub.f32 %v71, %v999
    %1001 = vmatmul.f32.gmra.mxu0 %v1000
    %v1002 = vpop.f32.mrf.mxu0
    %v1003 = vadd.f32 %v909, %v1002
    %v1004 = vand.u32 %v74, 4294901760
    %v1005 = vsub.f32 %v74, %v1004
    %1006 = vmatmul.f32.gmra.mxu0 %v1005
    %v1007 = vpop.f32.mrf.mxu0
    %v1008 = vadd.f32 %v913, %v1007
    %v1009 = vand.u32 %v77, 4294901760
    %v1010 = vsub.f32 %v77, %v1009
    %1011 = vmatmul.f32.gmra.mxu0 %v1010
    %v1012 = vpop.f32.mrf.mxu0
    %v1013 = vadd.f32 %v917, %v1012
    %v1014 = vand.u32 %v80, 4294901760
    %v1015 = vsub.f32 %v80, %v1014
    %1016 = vmatmul.f32.gmra.mxu0 %v1015
    %v1017 = vpop.f32.mrf.mxu0
    %v1018 = vadd.f32 %v921, %v1017
    %v1019 = vand.u32 %v83, 4294901760
    %v1020 = vsub.f32 %v83, %v1019
    %1021 = vmatmul.f32.gmra.mxu0 %v1020
    %v1022 = vpop.f32.mrf.mxu0
    %v1023 = vadd.f32 %v925, %v1022
    %v1024 = vand.u32 %v86, 4294901760
    %v1025 = vsub.f32 %v86, %v1024
    %1026 = vmatmul.f32.gmra.mxu0 %v1025
    %v1027 = vpop.f32.mrf.mxu0
    %v1028 = vadd.f32 %v929, %v1027
    %1029 = vdwg.mxu0
    %1030 = vmatpush.msra.mxu0 0.0
    %1031 = vmatpush.msra.mxu0 0.0
    %1032 = vmatpush.msra.mxu0 0.0
    %1033 = vmatpush.msra.mxu0 0.0
    %1034 = vmatpush.msra.mxu0 0.0
    %1035 = vmatpush.msra.mxu0 0.0
    %1036 = vmatpush.msra.mxu0 0.0
    %1037 = vmatpush.msra.mxu0 0.0
    %1038 = vmatpush.msra.mxu0 0.0
    %1039 = vmatpush.msra.mxu0 0.0
    %1040 = vmatpush.msra.mxu0 0.0
    %1041 = vmatpush.msra.mxu0 0.0
    %1042 = vmatpush.msra.mxu0 0.0
    %1043 = vmatpush.msra.mxu0 0.0
    %1044 = vmatpush.msra.mxu0 0.0
    %v1045 = vand.u32 %v38, 4294901760
    %1046 = vmatpush.msra.mxu0 %v1045
    %v1047 = vand.u32 %v41, 4294901760
    %v1048 = vsub.f32 %v41, %v1047
    %v1049 = vand.u32 %v1048, 4294901760
    %1050 = vmatmul.f32.gmra.mxu0 %v1049
    %v1051 = vpop.f32.mrf.mxu0
    %v1052 = vadd.f32 %v953, %v1051
    %v1053 = vand.u32 %v44, 4294901760
    %v1054 = vsub.f32 %v44, %v1053
    %v1055 = vand.u32 %v1054, 4294901760
    %1056 = vmatmul.f32.gmra.mxu0 %v1055
    %v1057 = vpop.f32.mrf.mxu0
    %v1058 = vadd.f32 %v958, %v1057
    %v1059 = vand.u32 %v47, 4294901760
    %v1060 = vsub.f32 %v47, %v1059
    %v1061 = vand.u32 %v1060, 4294901760
    %1062 = vmatmul.f32.gmra.mxu0 %v1061
    %v1063 = vpop.f32.mrf.mxu0
    %v1064 = vadd.f32 %v963, %v1063
    %v1065 = vand.u32 %v50, 4294901760
    %v1066 = vsub.f32 %v50, %v1065
    %v1067 = vand.u32 %v1066, 4294901760
    %1068 = vmatmul.f32.gmra.mxu0 %v1067
    %v1069 = vpop.f32.mrf.mxu0
    %v1070 = vadd.f32 %v968, %v1069
    %v1071 = vand.u32 %v53, 4294901760
    %v1072 = vsub.f32 %v53, %v1071
    %v1073 = vand.u32 %v1072, 4294901760
    %1074 = vmatmul.f32.gmra.mxu0 %v1073
    %v1075 = vpop.f32.mrf.mxu0
    %v1076 = vadd.f32 %v973, %v1075
    %v1077 = vand.u32 %v56, 4294901760
    %v1078 = vsub.f32 %v56, %v1077
    %v1079 = vand.u32 %v1078, 4294901760
    %1080 = vmatmul.f32.gmra.mxu0 %v1079
    %v1081 = vpop.f32.mrf.mxu0
    %v1082 = vadd.f32 %v978, %v1081
    %v1083 = vand.u32 %v59, 4294901760
    %v1084 = vsub.f32 %v59, %v1083
    %v1085 = vand.u32 %v1084, 4294901760
    %1086 = vmatmul.f32.gmra.mxu0 %v1085
    %v1087 = vpop.f32.mrf.mxu0
    %v1088 = vadd.f32 %v983, %v1087
    %v1089 = vand.u32 %v62, 4294901760
    %v1090 = vsub.f32 %v62, %v1089
    %v1091 = vand.u32 %v1090, 4294901760
    %1092 = vmatmul.f32.gmra.mxu0 %v1091
    %v1093 = vpop.f32.mrf.mxu0
    %v1094 = vadd.f32 %v988, %v1093
    %v1095 = vand.u32 %v65, 4294901760
    %v1096 = vsub.f32 %v65, %v1095
    %v1097 = vand.u32 %v1096, 4294901760
    %1098 = vmatmul.f32.gmra.mxu0 %v1097
    %v1099 = vpop.f32.mrf.mxu0
    %v1100 = vadd.f32 %v993, %v1099
    %v1101 = vand.u32 %v68, 4294901760
    %v1102 = vsub.f32 %v68, %v1101
    %v1103 = vand.u32 %v1102, 4294901760
    %1104 = vmatmul.f32.gmra.mxu0 %v1103
    %v1105 = vpop.f32.mrf.mxu0
    %v1106 = vadd.f32 %v998, %v1105
    %v1107 = vand.u32 %v71, 4294901760
    %v1108 = vsub.f32 %v71, %v1107
    %v1109 = vand.u32 %v1108, 4294901760
    %1110 = vmatmul.f32.gmra.mxu0 %v1109
    %v1111 = vpop.f32.mrf.mxu0
    %v1112 = vadd.f32 %v1003, %v1111
    %v1113 = vand.u32 %v74, 4294901760
    %v1114 = vsub.f32 %v74, %v1113
    %v1115 = vand.u32 %v1114, 4294901760
    %1116 = vmatmul.f32.gmra.mxu0 %v1115
    %v1117 = vpop.f32.mrf.mxu0
    %v1118 = vadd.f32 %v1008, %v1117
    %v1119 = vand.u32 %v77, 4294901760
    %v1120 = vsub.f32 %v77, %v1119
    %v1121 = vand.u32 %v1120, 4294901760
    %1122 = vmatmul.f32.gmra.mxu0 %v1121
    %v1123 = vpop.f32.mrf.mxu0
    %v1124 = vadd.f32 %v1013, %v1123
    %v1125 = vand.u32 %v80, 4294901760
    %v1126 = vsub.f32 %v80, %v1125
    %v1127 = vand.u32 %v1126, 4294901760
    %1128 = vmatmul.f32.gmra.mxu0 %v1127
    %v1129 = vpop.f32.mrf.mxu0
    %v1130 = vadd.f32 %v1018, %v1129
    %v1131 = vand.u32 %v83, 4294901760
    %v1132 = vsub.f32 %v83, %v1131
    %v1133 = vand.u32 %v1132, 4294901760
    %1134 = vmatmul.f32.gmra.mxu0 %v1133
    %v1135 = vpop.f32.mrf.mxu0
    %v1136 = vadd.f32 %v1023, %v1135
    %v1137 = vand.u32 %v86, 4294901760
    %v1138 = vsub.f32 %v86, %v1137
    %v1139 = vand.u32 %v1138, 4294901760
    %1140 = vmatmul.f32.gmra.mxu0 %v1139
    %v1141 = vpop.f32.mrf.mxu0
    %v1142 = vadd.f32 %v1028, %v1141
    %1143 = vdwg.mxu0
    %1144 = vmatpush.msra.mxu0 0.0
    %1145 = vmatpush.msra.mxu0 0.0
    %1146 = vmatpush.msra.mxu0 0.0
    %1147 = vmatpush.msra.mxu0 0.0
    %1148 = vmatpush.msra.mxu0 0.0
    %1149 = vmatpush.msra.mxu0 0.0
    %1150 = vmatpush.msra.mxu0 0.0
    %1151 = vmatpush.msra.mxu0 0.0
    %1152 = vmatpush.msra.mxu0 0.0
    %1153 = vmatpush.msra.mxu0 0.0
    %1154 = vmatpush.msra.mxu0 0.0
    %1155 = vmatpush.msra.mxu0 0.0
    %1156 = vmatpush.msra.mxu0 0.0
    %1157 = vmatpush.msra.mxu0 0.0
    %1158 = vmatpush.msra.mxu0 0.0
    %v1159 = vand.u32 %v38, 4294901760
    %v1160 = vsub.f32 %v38, %v1159
    %v1161 = vand.u32 %v1160, 4294901760
    %1162 = vmatpush.msra.mxu0 %v1161
    %v1163 = vand.u32 %v41, 4294901760
    %1164 = vmatmul.f32.gmra.mxu0 %v1163
    %v1165 = vpop.f32.mrf.mxu0
    %v1166 = vadd.f32 %v1052, %v1165
    %v1167 = vand.u32 %v44, 4294901760
    %1168 = vmatmul.f32.gmra.mxu0 %v1167
    %v1169 = vpop.f32.mrf.mxu0
    %v1170 = vadd.f32 %v1058, %v1169
    %v1171 = vand.u32 %v47, 4294901760
    %1172 = vmatmul.f32.gmra.mxu0 %v1171
    %v1173 = vpop.f32.mrf.mxu0
    %v1174 = vadd.f32 %v1064, %v1173
    %v1175 = vand.u32 %v50, 4294901760
    %1176 = vmatmul.f32.gmra.mxu0 %v1175
    %v1177 = vpop.f32.mrf.mxu0
    %v1178 = vadd.f32 %v1070, %v1177
    %v1179 = vand.u32 %v53, 4294901760
    %1180 = vmatmul.f32.gmra.mxu0 %v1179
    %v1181 = vpop.f32.mrf.mxu0
    %v1182 = vadd.f32 %v1076, %v1181
    %v1183 = vand.u32 %v56, 4294901760
    %1184 = vmatmul.f32.gmra.mxu0 %v1183
    %v1185 = vpop.f32.mrf.mxu0
    %v1186 = vadd.f32 %v1082, %v1185
    %v1187 = vand.u32 %v59, 4294901760
    %1188 = vmatmul.f32.gmra.mxu0 %v1187
    %v1189 = vpop.f32.mrf.mxu0
    %v1190 = vadd.f32 %v1088, %v1189
    %v1191 = vand.u32 %v62, 4294901760
    %1192 = vmatmul.f32.gmra.mxu0 %v1191
    %v1193 = vpop.f32.mrf.mxu0
    %v1194 = vadd.f32 %v1094, %v1193
    %v1195 = vand.u32 %v65, 4294901760
    %1196 = vmatmul.f32.gmra.mxu0 %v1195
    %v1197 = vpop.f32.mrf.mxu0
    %v1198 = vadd.f32 %v1100, %v1197
    %v1199 = vand.u32 %v68, 4294901760
    %1200 = vmatmul.f32.gmra.mxu0 %v1199
    %v1201 = vpop.f32.mrf.mxu0
    %v1202 = vadd.f32 %v1106, %v1201
    %v1203 = vand.u32 %v71, 4294901760
    %1204 = vmatmul.f32.gmra.mxu0 %v1203
    %v1205 = vpop.f32.mrf.mxu0
    %v1206 = vadd.f32 %v1112, %v1205
    %v1207 = vand.u32 %v74, 4294901760
    %1208 = vmatmul.f32.gmra.mxu0 %v1207
    %v1209 = vpop.f32.mrf.mxu0
    %v1210 = vadd.f32 %v1118, %v1209
    %v1211 = vand.u32 %v77, 4294901760
    %1212 = vmatmul.f32.gmra.mxu0 %v1211
    %v1213 = vpop.f32.mrf.mxu0
    %v1214 = vadd.f32 %v1124, %v1213
    %v1215 = vand.u32 %v80, 4294901760
    %1216 = vmatmul.f32.gmra.mxu0 %v1215
    %v1217 = vpop.f32.mrf.mxu0
    %v1218 = vadd.f32 %v1130, %v1217
    %v1219 = vand.u32 %v83, 4294901760
    %1220 = vmatmul.f32.gmra.mxu0 %v1219
    %v1221 = vpop.f32.mrf.mxu0
    %v1222 = vadd.f32 %v1136, %v1221
    %v1223 = vand.u32 %v86, 4294901760
    %1224 = vmatmul.f32.gmra.mxu0 %v1223
    %v1225 = vpop.f32.mrf.mxu0
    %v1226 = vadd.f32 %v1142, %v1225
    %1227 = vdwg.mxu0
    %1228 = vmatpush.msra.mxu0 0.0
    %1229 = vmatpush.msra.mxu0 0.0
    %1230 = vmatpush.msra.mxu0 0.0
    %1231 = vmatpush.msra.mxu0 0.0
    %1232 = vmatpush.msra.mxu0 0.0
    %1233 = vmatpush.msra.mxu0 0.0
    %1234 = vmatpush.msra.mxu0 0.0
    %1235 = vmatpush.msra.mxu0 0.0
    %1236 = vmatpush.msra.mxu0 0.0
    %1237 = vmatpush.msra.mxu0 0.0
    %1238 = vmatpush.msra.mxu0 0.0
    %1239 = vmatpush.msra.mxu0 0.0
    %1240 = vmatpush.msra.mxu0 0.0
    %1241 = vmatpush.msra.mxu0 0.0
    %1242 = vmatpush.msra.mxu0 0.0
    %v1243 = vand.u32 %v38, 4294901760
    %1244 = vmatpush.msra.mxu0 %v1243
    %v1245 = vand.u32 %v41, 4294901760
    %1246 = vmatmul.f32.gmra.mxu0 %v1245
    %v1247 = vpop.f32.mrf.mxu0
    %v1248 = vadd.f32 %v1166, %v1247
    %v1249 = vand.u32 %v44, 4294901760
    %1250 = vmatmul.f32.gmra.mxu0 %v1249
    %v1251 = vpop.f32.mrf.mxu0
    %v1252 = vadd.f32 %v1170, %v1251
    %v1253 = vand.u32 %v47, 4294901760
    %1254 = vmatmul.f32.gmra.mxu0 %v1253
    %v1255 = vpop.f32.mrf.mxu0
    %v1256 = vadd.f32 %v1174, %v1255
    %v1257 = vand.u32 %v50, 4294901760
    %1258 = vmatmul.f32.gmra.mxu0 %v1257
    %v1259 = vpop.f32.mrf.mxu0
    %v1260 = vadd.f32 %v1178, %v1259
    %v1261 = vand.u32 %v53, 4294901760
    %1262 = vmatmul.f32.gmra.mxu0 %v1261
    %v1263 = vpop.f32.mrf.mxu0
    %v1264 = vadd.f32 %v1182, %v1263
    %v1265 = vand.u32 %v56, 4294901760
    %1266 = vmatmul.f32.gmra.mxu0 %v1265
    %v1267 = vpop.f32.mrf.mxu0
    %v1268 = vadd.f32 %v1186, %v1267
    %v1269 = vand.u32 %v59, 4294901760
    %1270 = vmatmul.f32.gmra.mxu0 %v1269
    %v1271 = vpop.f32.mrf.mxu0
    %v1272 = vadd.f32 %v1190, %v1271
    %v1273 = vand.u32 %v62, 4294901760
    %1274 = vmatmul.f32.gmra.mxu0 %v1273
    %v1275 = vpop.f32.mrf.mxu0
    %v1276 = vadd.f32 %v1194, %v1275
    %v1277 = vand.u32 %v65, 4294901760
    %1278 = vmatmul.f32.gmra.mxu0 %v1277
    %v1279 = vpop.f32.mrf.mxu0
    %v1280 = vadd.f32 %v1198, %v1279
    %v1281 = vand.u32 %v68, 4294901760
    %1282 = vmatmul.f32.gmra.mxu0 %v1281
    %v1283 = vpop.f32.mrf.mxu0
    %v1284 = vadd.f32 %v1202, %v1283
    %v1285 = vand.u32 %v71, 4294901760
    %1286 = vmatmul.f32.gmra.mxu0 %v1285
    %v1287 = vpop.f32.mrf.mxu0
    %v1288 = vadd.f32 %v1206, %v1287
    %v1289 = vand.u32 %v74, 4294901760
    %1290 = vmatmul.f32.gmra.mxu0 %v1289
    %v1291 = vpop.f32.mrf.mxu0
    %v1292 = vadd.f32 %v1210, %v1291
    %v1293 = vand.u32 %v77, 4294901760
    %1294 = vmatmul.f32.gmra.mxu0 %v1293
    %v1295 = vpop.f32.mrf.mxu0
    %v1296 = vadd.f32 %v1214, %v1295
    %v1297 = vand.u32 %v80, 4294901760
    %1298 = vmatmul.f32.gmra.mxu0 %v1297
    %v1299 = vpop.f32.mrf.mxu0
    %v1300 = vadd.f32 %v1218, %v1299
    %v1301 = vand.u32 %v83, 4294901760
    %1302 = vmatmul.f32.gmra.mxu0 %v1301
    %v1303 = vpop.f32.mrf.mxu0
    %v1304 = vadd.f32 %v1222, %v1303
    %v1305 = vand.u32 %v86, 4294901760
    %1306 = vmatmul.f32.gmra.mxu0 %v1305
    %v1307 = vpop.f32.mrf.mxu0
    %v1308 = vadd.f32 %v1226, %v1307
    %1309 = vdwg.mxu0
    %v1310 = vmax.f32 %v637, 0.0
    %v1311 = vmax.f32 %v1248, 0.0
    %v1312 = vmax.f32 %v641, 0.0
    %v1313 = vmax.f32 %v1252, 0.0
    %v1314 = vmax.f32 %v645, 0.0
    %v1315 = vmax.f32 %v1256, 0.0
    %v1316 = vmax.f32 %v649, 0.0
    %v1317 = vmax.f32 %v1260, 0.0
    %v1318 = vmax.f32 %v653, 0.0
    %v1319 = vmax.f32 %v1264, 0.0
    %v1320 = vmax.f32 %v657, 0.0
    %v1321 = vmax.f32 %v1268, 0.0
    %v1322 = vmax.f32 %v661, 0.0
    %v1323 = vmax.f32 %v1272, 0.0
    %v1324 = vmax.f32 %v665, 0.0
    %v1325 = vmax.f32 %v1276, 0.0
    %v1326 = vmax.f32 %v669, 0.0
    %v1327 = vmax.f32 %v1280, 0.0
    %v1328 = vmax.f32 %v673, 0.0
    %v1329 = vmax.f32 %v1284, 0.0
    %v1330 = vmax.f32 %v677, 0.0
    %v1331 = vmax.f32 %v1288, 0.0
    %v1332 = vmax.f32 %v681, 0.0
    %v1333 = vmax.f32 %v1292, 0.0
    %v1334 = vmax.f32 %v685, 0.0
    %v1335 = vmax.f32 %v1296, 0.0
    %v1336 = vmax.f32 %v689, 0.0
    %v1337 = vmax.f32 %v1300, 0.0
    %v1338 = vmax.f32 %v693, 0.0
    %v1339 = vmax.f32 %v1304, 0.0
    %v1340 = vmax.f32 %v697, 0.0
    %v1341 = vmax.f32 %v1308, 0.0
    %v1342 = vand.u32 %v1340, 4294901760
    %1343 = vmatpush.msra.mxu0 %v1342
    %v1344 = vand.u32 %v1338, 4294901760
    %1345 = vmatpush.msra.mxu0 %v1344
    %v1346 = vand.u32 %v1336, 4294901760
    %1347 = vmatpush.msra.mxu0 %v1346
    %v1348 = vand.u32 %v1334, 4294901760
    %1349 = vmatpush.msra.mxu0 %v1348
    %v1350 = vand.u32 %v1332, 4294901760
    %1351 = vmatpush.msra.mxu0 %v1350
    %v1352 = vand.u32 %v1330, 4294901760
    %1353 = vmatpush.msra.mxu0 %v1352
    %v1354 = vand.u32 %v1328, 4294901760
    %1355 = vmatpush.msra.mxu0 %v1354
    %v1356 = vand.u32 %v1326, 4294901760
    %1357 = vmatpush.msra.mxu0 %v1356
    %v1358 = vand.u32 %v1324, 4294901760
    %1359 = vmatpush.msra.mxu0 %v1358
    %v1360 = vand.u32 %v1322, 4294901760
    %1361 = vmatpush.msra.mxu0 %v1360
    %v1362 = vand.u32 %v1320, 4294901760
    %1363 = vmatpush.msra.mxu0 %v1362
    %v1364 = vand.u32 %v1318, 4294901760
    %1365 = vmatpush.msra.mxu0 %v1364
    %v1366 = vand.u32 %v1316, 4294901760
    %1367 = vmatpush.msra.mxu0 %v1366
    %v1368 = vand.u32 %v1314, 4294901760
    %1369 = vmatpush.msra.mxu0 %v1368
    %v1370 = vand.u32 %v1312, 4294901760
    %1371 = vmatpush.msra.mxu0 %v1370
    %v1372 = vand.u32 %v1310, 4294901760
    %1373 = vmatpush.msra.mxu0 %v1372
    %v1374 = vand.u32 %v35, 4294901760
    %v1375 = vsub.f32 %v35, %v1374
    %v1376 = vand.u32 %v1375, 4294901760
    %v1377 = vsub.f32 %v1375, %v1376
    %v1378 = vand.u32 %v1377, 4294901760
    %1379 = vmatmul.f32.gmra.mxu0 %v1378
    %v1380 = vpop.f32.mrf.mxu0
    %v1381 = vadd.f32 0.0, %v1380
    %1382 = vdwg.mxu0
    %v1383 = vand.u32 %v1340, 4294901760
    %v1384 = vsub.f32 %v1340, %v1383
    %v1385 = vand.u32 %v1384, 4294901760
    %v1386 = vsub.f32 %v1384, %v1385
    %v1387 = vand.u32 %v1386, 4294901760
    %1388 = vmatpush.msra.mxu0 %v1387
    %v1389 = vand.u32 %v1338, 4294901760
    %v1390 = vsub.f32 %v1338, %v1389
    %v1391 = vand.u32 %v1390, 4294901760
    %v1392 = vsub.f32 %v1390, %v1391
    %v1393 = vand.u32 %v1392, 4294901760
    %1394 = vmatpush.msra.mxu0 %v1393
    %v1395 = vand.u32 %v1336, 4294901760
    %v1396 = vsub.f32 %v1336, %v1395
    %v1397 = vand.u32 %v1396, 4294901760
    %v1398 = vsub.f32 %v1396, %v1397
    %v1399 = vand.u32 %v1398, 4294901760
    %1400 = vmatpush.msra.mxu0 %v1399
    %v1401 = vand.u32 %v1334, 4294901760
    %v1402 = vsub.f32 %v1334, %v1401
    %v1403 = vand.u32 %v1402, 4294901760
    %v1404 = vsub.f32 %v1402, %v1403
    %v1405 = vand.u32 %v1404, 4294901760
    %1406 = vmatpush.msra.mxu0 %v1405
    %v1407 = vand.u32 %v1332, 4294901760
    %v1408 = vsub.f32 %v1332, %v1407
    %v1409 = vand.u32 %v1408, 4294901760
    %v1410 = vsub.f32 %v1408, %v1409
    %v1411 = vand.u32 %v1410, 4294901760
    %1412 = vmatpush.msra.mxu0 %v1411
    %v1413 = vand.u32 %v1330, 4294901760
    %v1414 = vsub.f32 %v1330, %v1413
    %v1415 = vand.u32 %v1414, 4294901760
    %v1416 = vsub.f32 %v1414, %v1415
    %v1417 = vand.u32 %v1416, 4294901760
    %1418 = vmatpush.msra.mxu0 %v1417
    %v1419 = vand.u32 %v1328, 4294901760
    %v1420 = vsub.f32 %v1328, %v1419
    %v1421 = vand.u32 %v1420, 4294901760
    %v1422 = vsub.f32 %v1420, %v1421
    %v1423 = vand.u32 %v1422, 4294901760
    %1424 = vmatpush.msra.mxu0 %v1423
    %v1425 = vand.u32 %v1326, 4294901760
    %v1426 = vsub.f32 %v1326, %v1425
    %v1427 = vand.u32 %v1426, 4294901760
    %v1428 = vsub.f32 %v1426, %v1427
    %v1429 = vand.u32 %v1428, 4294901760
    %1430 = vmatpush.msra.mxu0 %v1429
    %v1431 = vand.u32 %v1324, 4294901760
    %v1432 = vsub.f32 %v1324, %v1431
    %v1433 = vand.u32 %v1432, 4294901760
    %v1434 = vsub.f32 %v1432, %v1433
    %v1435 = vand.u32 %v1434, 4294901760
    %1436 = vmatpush.msra.mxu0 %v1435
    %v1437 = vand.u32 %v1322, 4294901760
    %v1438 = vsub.f32 %v1322, %v1437
    %v1439 = vand.u32 %v1438, 4294901760
    %v1440 = vsub.f32 %v1438, %v1439
    %v1441 = vand.u32 %v1440, 4294901760
    %1442 = vmatpush.msra.mxu0 %v1441
    %v1443 = vand.u32 %v1320, 4294901760
    %v1444 = vsub.f32 %v1320, %v1443
    %v1445 = vand.u32 %v1444, 4294901760
    %v1446 = vsub.f32 %v1444, %v1445
    %v1447 = vand.u32 %v1446, 4294901760
    %1448 = vmatpush.msra.mxu0 %v1447
    %v1449 = vand.u32 %v1318, 4294901760
    %v1450 = vsub.f32 %v1318, %v1449
    %v1451 = vand.u32 %v1450, 4294901760
    %v1452 = vsub.f32 %v1450, %v1451
    %v1453 = vand.u32 %v1452, 4294901760
    %1454 = vmatpush.msra.mxu0 %v1453
    %v1455 = vand.u32 %v1316, 4294901760
    %v1456 = vsub.f32 %v1316, %v1455
    %v1457 = vand.u32 %v1456, 4294901760
    %v1458 = vsub.f32 %v1456, %v1457
    %v1459 = vand.u32 %v1458, 4294901760
    %1460 = vmatpush.msra.mxu0 %v1459
    %v1461 = vand.u32 %v1314, 4294901760
    %v1462 = vsub.f32 %v1314, %v1461
    %v1463 = vand.u32 %v1462, 4294901760
    %v1464 = vsub.f32 %v1462, %v1463
    %v1465 = vand.u32 %v1464, 4294901760
    %1466 = vmatpush.msra.mxu0 %v1465
    %v1467 = vand.u32 %v1312, 4294901760
    %v1468 = vsub.f32 %v1312, %v1467
    %v1469 = vand.u32 %v1468, 4294901760
    %v1470 = vsub.f32 %v1468, %v1469
    %v1471 = vand.u32 %v1470, 4294901760
    %1472 = vmatpush.msra.mxu0 %v1471
    %v1473 = vand.u32 %v1310, 4294901760
    %v1474 = vsub.f32 %v1310, %v1473
    %v1475 = vand.u32 %v1474, 4294901760
    %v1476 = vsub.f32 %v1474, %v1475
    %v1477 = vand.u32 %v1476, 4294901760
    %1478 = vmatpush.msra.mxu0 %v1477
    %v1479 = vand.u32 %v35, 4294901760
    %1480 = vmatmul.f32.gmra.mxu0 %v1479
    %v1481 = vpop.f32.mrf.mxu0
    %v1482 = vadd.f32 %v1381, %v1481
    %1483 = vdwg.mxu0
    %v1484 = vand.u32 %v1340, 4294901760
    %v1485 = vsub.f32 %v1340, %v1484
    %1486 = vmatpush.msra.mxu0 %v1485
    %v1487 = vand.u32 %v1338, 4294901760
    %v1488 = vsub.f32 %v1338, %v1487
    %1489 = vmatpush.msra.mxu0 %v1488
    %v1490 = vand.u32 %v1336, 4294901760
    %v1491 = vsub.f32 %v1336, %v1490
    %1492 = vmatpush.msra.mxu0 %v1491
    %v1493 = vand.u32 %v1334, 4294901760
    %v1494 = vsub.f32 %v1334, %v1493
    %1495 = vmatpush.msra.mxu0 %v1494
    %v1496 = vand.u32 %v1332, 4294901760
    %v1497 = vsub.f32 %v1332, %v1496
    %1498 = vmatpush.msra.mxu0 %v1497
    %v1499 = vand.u32 %v1330, 4294901760
    %v1500 = vsub.f32 %v1330, %v1499
    %1501 = vmatpush.msra.mxu0 %v1500
    %v1502 = vand.u32 %v1328, 4294901760
    %v1503 = vsub.f32 %v1328, %v1502
    %1504 = vmatpush.msra.mxu0 %v1503
    %v1505 = vand.u32 %v1326, 4294901760
    %v1506 = vsub.f32 %v1326, %v1505
    %1507 = vmatpush.msra.mxu0 %v1506
    %v1508 = vand.u32 %v1324, 4294901760
    %v1509 = vsub.f32 %v1324, %v1508
    %1510 = vmatpush.msra.mxu0 %v1509
    %v1511 = vand.u32 %v1322, 4294901760
    %v1512 = vsub.f32 %v1322, %v1511
    %1513 = vmatpush.msra.mxu0 %v1512
    %v1514 = vand.u32 %v1320, 4294901760
    %v1515 = vsub.f32 %v1320, %v1514
    %1516 = vmatpush.msra.mxu0 %v1515
    %v1517 = vand.u32 %v1318, 4294901760
    %v1518 = vsub.f32 %v1318, %v1517
    %1519 = vmatpush.msra.mxu0 %v1518
    %v1520 = vand.u32 %v1316, 4294901760
    %v1521 = vsub.f32 %v1316, %v1520
    %1522 = vmatpush.msra.mxu0 %v1521
    %v1523 = vand.u32 %v1314, 4294901760
    %v1524 = vsub.f32 %v1314, %v1523
    %1525 = vmatpush.msra.mxu0 %v1524
    %v1526 = vand.u32 %v1312, 4294901760
    %v1527 = vsub.f32 %v1312, %v1526
    %1528 = vmatpush.msra.mxu0 %v1527
    %v1529 = vand.u32 %v1310, 4294901760
    %v1530 = vsub.f32 %v1310, %v1529
    %1531 = vmatpush.msra.mxu0 %v1530
    %v1532 = vand.u32 %v35, 4294901760
    %v1533 = vsub.f32 %v35, %v1532
    %1534 = vmatmul.f32.gmra.mxu0 %v1533
    %v1535 = vpop.f32.mrf.mxu0
    %v1536 = vadd.f32 %v1482, %v1535
    %1537 = vdwg.mxu0
    %v1538 = vand.u32 %v1340, 4294901760
    %1539 = vmatpush.msra.mxu0 %v1538
    %v1540 = vand.u32 %v1338, 4294901760
    %1541 = vmatpush.msra.mxu0 %v1540
    %v1542 = vand.u32 %v1336, 4294901760
    %1543 = vmatpush.msra.mxu0 %v1542
    %v1544 = vand.u32 %v1334, 4294901760
    %1545 = vmatpush.msra.mxu0 %v1544
    %v1546 = vand.u32 %v1332, 4294901760
    %1547 = vmatpush.msra.mxu0 %v1546
    %v1548 = vand.u32 %v1330, 4294901760
    %1549 = vmatpush.msra.mxu0 %v1548
    %v1550 = vand.u32 %v1328, 4294901760
    %1551 = vmatpush.msra.mxu0 %v1550
    %v1552 = vand.u32 %v1326, 4294901760
    %1553 = vmatpush.msra.mxu0 %v1552
    %v1554 = vand.u32 %v1324, 4294901760
    %1555 = vmatpush.msra.mxu0 %v1554
    %v1556 = vand.u32 %v1322, 4294901760
    %1557 = vmatpush.msra.mxu0 %v1556
    %v1558 = vand.u32 %v1320, 4294901760
    %1559 = vmatpush.msra.mxu0 %v1558
    %v1560 = vand.u32 %v1318, 4294901760
    %1561 = vmatpush.msra.mxu0 %v1560
    %v1562 = vand.u32 %v1316, 4294901760
    %1563 = vmatpush.msra.mxu0 %v1562
    %v1564 = vand.u32 %v1314, 4294901760
    %1565 = vmatpush.msra.mxu0 %v1564
    %v1566 = vand.u32 %v1312, 4294901760
    %1567 = vmatpush.msra.mxu0 %v1566
    %v1568 = vand.u32 %v1310, 4294901760
    %1569 = vmatpush.msra.mxu0 %v1568
    %v1570 = vand.u32 %v35, 4294901760
    %v1571 = vsub.f32 %v35, %v1570
    %v1572 = vand.u32 %v1571, 4294901760
    %1573 = vmatmul.f32.gmra.mxu0 %v1572
    %v1574 = vpop.f32.mrf.mxu0
    %v1575 = vadd.f32 %v1536, %v1574
    %1576 = vdwg.mxu0
    %v1577 = vand.u32 %v1340, 4294901760
    %v1578 = vsub.f32 %v1340, %v1577
    %v1579 = vand.u32 %v1578, 4294901760
    %1580 = vmatpush.msra.mxu0 %v1579
    %v1581 = vand.u32 %v1338, 4294901760
    %v1582 = vsub.f32 %v1338, %v1581
    %v1583 = vand.u32 %v1582, 4294901760
    %1584 = vmatpush.msra.mxu0 %v1583
    %v1585 = vand.u32 %v1336, 4294901760
    %v1586 = vsub.f32 %v1336, %v1585
    %v1587 = vand.u32 %v1586, 4294901760
    %1588 = vmatpush.msra.mxu0 %v1587
    %v1589 = vand.u32 %v1334, 4294901760
    %v1590 = vsub.f32 %v1334, %v1589
    %v1591 = vand.u32 %v1590, 4294901760
    %1592 = vmatpush.msra.mxu0 %v1591
    %v1593 = vand.u32 %v1332, 4294901760
    %v1594 = vsub.f32 %v1332, %v1593
    %v1595 = vand.u32 %v1594, 4294901760
    %1596 = vmatpush.msra.mxu0 %v1595
    %v1597 = vand.u32 %v1330, 4294901760
    %v1598 = vsub.f32 %v1330, %v1597
    %v1599 = vand.u32 %v1598, 4294901760
    %1600 = vmatpush.msra.mxu0 %v1599
    %v1601 = vand.u32 %v1328, 4294901760
    %v1602 = vsub.f32 %v1328, %v1601
    %v1603 = vand.u32 %v1602, 4294901760
    %1604 = vmatpush.msra.mxu0 %v1603
    %v1605 = vand.u32 %v1326, 4294901760
    %v1606 = vsub.f32 %v1326, %v1605
    %v1607 = vand.u32 %v1606, 4294901760
    %1608 = vmatpush.msra.mxu0 %v1607
    %v1609 = vand.u32 %v1324, 4294901760
    %v1610 = vsub.f32 %v1324, %v1609
    %v1611 = vand.u32 %v1610, 4294901760
    %1612 = vmatpush.msra.mxu0 %v1611
    %v1613 = vand.u32 %v1322, 4294901760
    %v1614 = vsub.f32 %v1322, %v1613
    %v1615 = vand.u32 %v1614, 4294901760
    %1616 = vmatpush.msra.mxu0 %v1615
    %v1617 = vand.u32 %v1320, 4294901760
    %v1618 = vsub.f32 %v1320, %v1617
    %v1619 = vand.u32 %v1618, 4294901760
    %1620 = vmatpush.msra.mxu0 %v1619
    %v1621 = vand.u32 %v1318, 4294901760
    %v1622 = vsub.f32 %v1318, %v1621
    %v1623 = vand.u32 %v1622, 4294901760
    %1624 = vmatpush.msra.mxu0 %v1623
    %v1625 = vand.u32 %v1316, 4294901760
    %v1626 = vsub.f32 %v1316, %v1625
    %v1627 = vand.u32 %v1626, 4294901760
    %1628 = vmatpush.msra.mxu0 %v1627
    %v1629 = vand.u32 %v1314, 4294901760
    %v1630 = vsub.f32 %v1314, %v1629
    %v1631 = vand.u32 %v1630, 4294901760
    %1632 = vmatpush.msra.mxu0 %v1631
    %v1633 = vand.u32 %v1312, 4294901760
    %v1634 = vsub.f32 %v1312, %v1633
    %v1635 = vand.u32 %v1634, 4294901760
    %1636 = vmatpush.msra.mxu0 %v1635
    %v1637 = vand.u32 %v1310, 4294901760
    %v1638 = vsub.f32 %v1310, %v1637
    %v1639 = vand.u32 %v1638, 4294901760
    %1640 = vmatpush.msra.mxu0 %v1639
    %v1641 = vand.u32 %v35, 4294901760
    %1642 = vmatmul.f32.gmra.mxu0 %v1641
    %v1643 = vpop.f32.mrf.mxu0
    %v1644 = vadd.f32 %v1575, %v1643
    %1645 = vdwg.mxu0
    %v1646 = vand.u32 %v1340, 4294901760
    %1647 = vmatpush.msra.mxu0 %v1646
    %v1648 = vand.u32 %v1338, 4294901760
    %1649 = vmatpush.msra.mxu0 %v1648
    %v1650 = vand.u32 %v1336, 4294901760
    %1651 = vmatpush.msra.mxu0 %v1650
    %v1652 = vand.u32 %v1334, 4294901760
    %1653 = vmatpush.msra.mxu0 %v1652
    %v1654 = vand.u32 %v1332, 4294901760
    %1655 = vmatpush.msra.mxu0 %v1654
    %v1656 = vand.u32 %v1330, 4294901760
    %1657 = vmatpush.msra.mxu0 %v1656
    %v1658 = vand.u32 %v1328, 4294901760
    %1659 = vmatpush.msra.mxu0 %v1658
    %v1660 = vand.u32 %v1326, 4294901760
    %1661 = vmatpush.msra.mxu0 %v1660
    %v1662 = vand.u32 %v1324, 4294901760
    %1663 = vmatpush.msra.mxu0 %v1662
    %v1664 = vand.u32 %v1322, 4294901760
    %1665 = vmatpush.msra.mxu0 %v1664
    %v1666 = vand.u32 %v1320, 4294901760
    %1667 = vmatpush.msra.mxu0 %v1666
    %v1668 = vand.u32 %v1318, 4294901760
    %1669 = vmatpush.msra.mxu0 %v1668
    %v1670 = vand.u32 %v1316, 4294901760
    %1671 = vmatpush.msra.mxu0 %v1670
    %v1672 = vand.u32 %v1314, 4294901760
    %1673 = vmatpush.msra.mxu0 %v1672
    %v1674 = vand.u32 %v1312, 4294901760
    %1675 = vmatpush.msra.mxu0 %v1674
    %v1676 = vand.u32 %v1310, 4294901760
    %1677 = vmatpush.msra.mxu0 %v1676
    %v1678 = vand.u32 %v35, 4294901760
    %1679 = vmatmul.f32.gmra.mxu0 %v1678
    %v1680 = vpop.f32.mrf.mxu0
    %v1681 = vadd.f32 %v1644, %v1680
    %1682 = vdwg.mxu0
    %v1683 = vand.u32 %v1341, 4294901760
    %1684 = vmatpush.msra.mxu0 %v1683
    %v1685 = vand.u32 %v1339, 4294901760
    %1686 = vmatpush.msra.mxu0 %v1685
    %v1687 = vand.u32 %v1337, 4294901760
    %1688 = vmatpush.msra.mxu0 %v1687
    %v1689 = vand.u32 %v1335, 4294901760
    %1690 = vmatpush.msra.mxu0 %v1689
    %v1691 = vand.u32 %v1333, 4294901760
    %1692 = vmatpush.msra.mxu0 %v1691
    %v1693 = vand.u32 %v1331, 4294901760
    %1694 = vmatpush.msra.mxu0 %v1693
    %v1695 = vand.u32 %v1329, 4294901760
    %1696 = vmatpush.msra.mxu0 %v1695
    %v1697 = vand.u32 %v1327, 4294901760
    %1698 = vmatpush.msra.mxu0 %v1697
    %v1699 = vand.u32 %v1325, 4294901760
    %1700 = vmatpush.msra.mxu0 %v1699
    %v1701 = vand.u32 %v1323, 4294901760
    %1702 = vmatpush.msra.mxu0 %v1701
    %v1703 = vand.u32 %v1321, 4294901760
    %1704 = vmatpush.msra.mxu0 %v1703
    %v1705 = vand.u32 %v1319, 4294901760
    %1706 = vmatpush.msra.mxu0 %v1705
    %v1707 = vand.u32 %v1317, 4294901760
    %1708 = vmatpush.msra.mxu0 %v1707
    %v1709 = vand.u32 %v1315, 4294901760
    %1710 = vmatpush.msra.mxu0 %v1709
    %v1711 = vand.u32 %v1313, 4294901760
    %1712 = vmatpush.msra.mxu0 %v1711
    %v1713 = vand.u32 %v1311, 4294901760
    %1714 = vmatpush.msra.mxu0 %v1713
    %v1715 = vand.u32 %v35, 4294901760
    %v1716 = vsub.f32 %v35, %v1715
    %v1717 = vand.u32 %v1716, 4294901760
    %v1718 = vsub.f32 %v1716, %v1717
    %v1719 = vand.u32 %v1718, 4294901760
    %1720 = vmatmul.f32.gmra.mxu0 %v1719
    %v1721 = vpop.f32.mrf.mxu0
    %v1722 = vadd.f32 0.0, %v1721
    %1723 = vdwg.mxu0
    %v1724 = vand.u32 %v1341, 4294901760
    %v1725 = vsub.f32 %v1341, %v1724
    %v1726 = vand.u32 %v1725, 4294901760
    %v1727 = vsub.f32 %v1725, %v1726
    %v1728 = vand.u32 %v1727, 4294901760
    %1729 = vmatpush.msra.mxu0 %v1728
    %v1730 = vand.u32 %v1339, 4294901760
    %v1731 = vsub.f32 %v1339, %v1730
    %v1732 = vand.u32 %v1731, 4294901760
    %v1733 = vsub.f32 %v1731, %v1732
    %v1734 = vand.u32 %v1733, 4294901760
    %1735 = vmatpush.msra.mxu0 %v1734
    %v1736 = vand.u32 %v1337, 4294901760
    %v1737 = vsub.f32 %v1337, %v1736
    %v1738 = vand.u32 %v1737, 4294901760
    %v1739 = vsub.f32 %v1737, %v1738
    %v1740 = vand.u32 %v1739, 4294901760
    %1741 = vmatpush.msra.mxu0 %v1740
    %v1742 = vand.u32 %v1335, 4294901760
    %v1743 = vsub.f32 %v1335, %v1742
    %v1744 = vand.u32 %v1743, 4294901760
    %v1745 = vsub.f32 %v1743, %v1744
    %v1746 = vand.u32 %v1745, 4294901760
    %1747 = vmatpush.msra.mxu0 %v1746
    %v1748 = vand.u32 %v1333, 4294901760
    %v1749 = vsub.f32 %v1333, %v1748
    %v1750 = vand.u32 %v1749, 4294901760
    %v1751 = vsub.f32 %v1749, %v1750
    %v1752 = vand.u32 %v1751, 4294901760
    %1753 = vmatpush.msra.mxu0 %v1752
    %v1754 = vand.u32 %v1331, 4294901760
    %v1755 = vsub.f32 %v1331, %v1754
    %v1756 = vand.u32 %v1755, 4294901760
    %v1757 = vsub.f32 %v1755, %v1756
    %v1758 = vand.u32 %v1757, 4294901760
    %1759 = vmatpush.msra.mxu0 %v1758
    %v1760 = vand.u32 %v1329, 4294901760
    %v1761 = vsub.f32 %v1329, %v1760
    %v1762 = vand.u32 %v1761, 4294901760
    %v1763 = vsub.f32 %v1761, %v1762
    %v1764 = vand.u32 %v1763, 4294901760
    %1765 = vmatpush.msra.mxu0 %v1764
    %v1766 = vand.u32 %v1327, 4294901760
    %v1767 = vsub.f32 %v1327, %v1766
    %v1768 = vand.u32 %v1767, 4294901760
    %v1769 = vsub.f32 %v1767, %v1768
    %v1770 = vand.u32 %v1769, 4294901760
    %1771 = vmatpush.msra.mxu0 %v1770
    %v1772 = vand.u32 %v1325, 4294901760
    %v1773 = vsub.f32 %v1325, %v1772
    %v1774 = vand.u32 %v1773, 4294901760
    %v1775 = vsub.f32 %v1773, %v1774
    %v1776 = vand.u32 %v1775, 4294901760
    %1777 = vmatpush.msra.mxu0 %v1776
    %v1778 = vand.u32 %v1323, 4294901760
    %v1779 = vsub.f32 %v1323, %v1778
    %v1780 = vand.u32 %v1779, 4294901760
    %v1781 = vsub.f32 %v1779, %v1780
    %v1782 = vand.u32 %v1781, 4294901760
    %1783 = vmatpush.msra.mxu0 %v1782
    %v1784 = vand.u32 %v1321, 4294901760
    %v1785 = vsub.f32 %v1321, %v1784
    %v1786 = vand.u32 %v1785, 4294901760
    %v1787 = vsub.f32 %v1785, %v1786
    %v1788 = vand.u32 %v1787, 4294901760
    %1789 = vmatpush.msra.mxu0 %v1788
    %v1790 = vand.u32 %v1319, 4294901760
    %v1791 = vsub.f32 %v1319, %v1790
    %v1792 = vand.u32 %v1791, 4294901760
    %v1793 = vsub.f32 %v1791, %v1792
    %v1794 = vand.u32 %v1793, 4294901760
    %1795 = vmatpush.msra.mxu0 %v1794
    %v1796 = vand.u32 %v1317, 4294901760
    %v1797 = vsub.f32 %v1317, %v1796
    %v1798 = vand.u32 %v1797, 4294901760
    %v1799 = vsub.f32 %v1797, %v1798
    %v1800 = vand.u32 %v1799, 4294901760
    %1801 = vmatpush.msra.mxu0 %v1800
    %v1802 = vand.u32 %v1315, 4294901760
    %v1803 = vsub.f32 %v1315, %v1802
    %v1804 = vand.u32 %v1803, 4294901760
    %v1805 = vsub.f32 %v1803, %v1804
    %v1806 = vand.u32 %v1805, 4294901760
    %1807 = vmatpush.msra.mxu0 %v1806
    %v1808 = vand.u32 %v1313, 4294901760
    %v1809 = vsub.f32 %v1313, %v1808
    %v1810 = vand.u32 %v1809, 4294901760
    %v1811 = vsub.f32 %v1809, %v1810
    %v1812 = vand.u32 %v1811, 4294901760
    %1813 = vmatpush.msra.mxu0 %v1812
    %v1814 = vand.u32 %v1311, 4294901760
    %v1815 = vsub.f32 %v1311, %v1814
    %v1816 = vand.u32 %v1815, 4294901760
    %v1817 = vsub.f32 %v1815, %v1816
    %v1818 = vand.u32 %v1817, 4294901760
    %1819 = vmatpush.msra.mxu0 %v1818
    %v1820 = vand.u32 %v35, 4294901760
    %1821 = vmatmul.f32.gmra.mxu0 %v1820
    %v1822 = vpop.f32.mrf.mxu0
    %v1823 = vadd.f32 %v1722, %v1822
    %1824 = vdwg.mxu0
    %v1825 = vand.u32 %v1341, 4294901760
    %v1826 = vsub.f32 %v1341, %v1825
    %1827 = vmatpush.msra.mxu0 %v1826
    %v1828 = vand.u32 %v1339, 4294901760
    %v1829 = vsub.f32 %v1339, %v1828
    %1830 = vmatpush.msra.mxu0 %v1829
    %v1831 = vand.u32 %v1337, 4294901760
    %v1832 = vsub.f32 %v1337, %v1831
    %1833 = vmatpush.msra.mxu0 %v1832
    %v1834 = vand.u32 %v1335, 4294901760
    %v1835 = vsub.f32 %v1335, %v1834
    %1836 = vmatpush.msra.mxu0 %v1835
    %v1837 = vand.u32 %v1333, 4294901760
    %v1838 = vsub.f32 %v1333, %v1837
    %1839 = vmatpush.msra.mxu0 %v1838
    %v1840 = vand.u32 %v1331, 4294901760
    %v1841 = vsub.f32 %v1331, %v1840
    %1842 = vmatpush.msra.mxu0 %v1841
    %v1843 = vand.u32 %v1329, 4294901760
    %v1844 = vsub.f32 %v1329, %v1843
    %1845 = vmatpush.msra.mxu0 %v1844
    %v1846 = vand.u32 %v1327, 4294901760
    %v1847 = vsub.f32 %v1327, %v1846
    %1848 = vmatpush.msra.mxu0 %v1847
    %v1849 = vand.u32 %v1325, 4294901760
    %v1850 = vsub.f32 %v1325, %v1849
    %1851 = vmatpush.msra.mxu0 %v1850
    %v1852 = vand.u32 %v1323, 4294901760
    %v1853 = vsub.f32 %v1323, %v1852
    %1854 = vmatpush.msra.mxu0 %v1853
    %v1855 = vand.u32 %v1321, 4294901760
    %v1856 = vsub.f32 %v1321, %v1855
    %1857 = vmatpush.msra.mxu0 %v1856
    %v1858 = vand.u32 %v1319, 4294901760
    %v1859 = vsub.f32 %v1319, %v1858
    %1860 = vmatpush.msra.mxu0 %v1859
    %v1861 = vand.u32 %v1317, 4294901760
    %v1862 = vsub.f32 %v1317, %v1861
    %1863 = vmatpush.msra.mxu0 %v1862
    %v1864 = vand.u32 %v1315, 4294901760
    %v1865 = vsub.f32 %v1315, %v1864
    %1866 = vmatpush.msra.mxu0 %v1865
    %v1867 = vand.u32 %v1313, 4294901760
    %v1868 = vsub.f32 %v1313, %v1867
    %1869 = vmatpush.msra.mxu0 %v1868
    %v1870 = vand.u32 %v1311, 4294901760
    %v1871 = vsub.f32 %v1311, %v1870
    %1872 = vmatpush.msra.mxu0 %v1871
    %v1873 = vand.u32 %v35, 4294901760
    %v1874 = vsub.f32 %v35, %v1873
    %1875 = vmatmul.f32.gmra.mxu0 %v1874
    %v1876 = vpop.f32.mrf.mxu0
    %v1877 = vadd.f32 %v1823, %v1876
    %1878 = vdwg.mxu0
    %v1879 = vand.u32 %v1341, 4294901760
    %1880 = vmatpush.msra.mxu0 %v1879
    %v1881 = vand.u32 %v1339, 4294901760
    %1882 = vmatpush.msra.mxu0 %v1881
    %v1883 = vand.u32 %v1337, 4294901760
    %1884 = vmatpush.msra.mxu0 %v1883
    %v1885 = vand.u32 %v1335, 4294901760
    %1886 = vmatpush.msra.mxu0 %v1885
    %v1887 = vand.u32 %v1333, 4294901760
    %1888 = vmatpush.msra.mxu0 %v1887
    %v1889 = vand.u32 %v1331, 4294901760
    %1890 = vmatpush.msra.mxu0 %v1889
    %v1891 = vand.u32 %v1329, 4294901760
    %1892 = vmatpush.msra.mxu0 %v1891
    %v1893 = vand.u32 %v1327, 4294901760
    %1894 = vmatpush.msra.mxu0 %v1893
    %v1895 = vand.u32 %v1325, 4294901760
    %1896 = vmatpush.msra.mxu0 %v1895
    %v1897 = vand.u32 %v1323, 4294901760
    %1898 = vmatpush.msra.mxu0 %v1897
    %v1899 = vand.u32 %v1321, 4294901760
    %1900 = vmatpush.msra.mxu0 %v1899
    %v1901 = vand.u32 %v1319, 4294901760
    %1902 = vmatpush.msra.mxu0 %v1901
    %v1903 = vand.u32 %v1317, 4294901760
    %1904 = vmatpush.msra.mxu0 %v1903
    %v1905 = vand.u32 %v1315, 4294901760
    %1906 = vmatpush.msra.mxu0 %v1905
    %v1907 = vand.u32 %v1313, 4294901760
    %1908 = vmatpush.msra.mxu0 %v1907
    %v1909 = vand.u32 %v1311, 4294901760
    %1910 = vmatpush.msra.mxu0 %v1909
    %v1911 = vand.u32 %v35, 4294901760
    %v1912 = vsub.f32 %v35, %v1911
    %v1913 = vand.u32 %v1912, 4294901760
    %1914 = vmatmul.f32.gmra.mxu0 %v1913
    %v1915 = vpop.f32.mrf.mxu0
    %v1916 = vadd.f32 %v1877, %v1915
    %1917 = vdwg.mxu0
    %v1918 = vand.u32 %v1341, 4294901760
    %v1919 = vsub.f32 %v1341, %v1918
    %v1920 = vand.u32 %v1919, 4294901760
    %1921 = vmatpush.msra.mxu0 %v1920
    %v1922 = vand.u32 %v1339, 4294901760
    %v1923 = vsub.f32 %v1339, %v1922
    %v1924 = vand.u32 %v1923, 4294901760
    %1925 = vmatpush.msra.mxu0 %v1924
    %v1926 = vand.u32 %v1337, 4294901760
    %v1927 = vsub.f32 %v1337, %v1926
    %v1928 = vand.u32 %v1927, 4294901760
    %1929 = vmatpush.msra.mxu0 %v1928
    %v1930 = vand.u32 %v1335, 4294901760
    %v1931 = vsub.f32 %v1335, %v1930
    %v1932 = vand.u32 %v1931, 4294901760
    %1933 = vmatpush.msra.mxu0 %v1932
    %v1934 = vand.u32 %v1333, 4294901760
    %v1935 = vsub.f32 %v1333, %v1934
    %v1936 = vand.u32 %v1935, 4294901760
    %1937 = vmatpush.msra.mxu0 %v1936
    %v1938 = vand.u32 %v1331, 4294901760
    %v1939 = vsub.f32 %v1331, %v1938
    %v1940 = vand.u32 %v1939, 4294901760
    %1941 = vmatpush.msra.mxu0 %v1940
    %v1942 = vand.u32 %v1329, 4294901760
    %v1943 = vsub.f32 %v1329, %v1942
    %v1944 = vand.u32 %v1943, 4294901760
    %1945 = vmatpush.msra.mxu0 %v1944
    %v1946 = vand.u32 %v1327, 4294901760
    %v1947 = vsub.f32 %v1327, %v1946
    %v1948 = vand.u32 %v1947, 4294901760
    %1949 = vmatpush.msra.mxu0 %v1948
    %v1950 = vand.u32 %v1325, 4294901760
    %v1951 = vsub.f32 %v1325, %v1950
    %v1952 = vand.u32 %v1951, 4294901760
    %1953 = vmatpush.msra.mxu0 %v1952
    %v1954 = vand.u32 %v1323, 4294901760
    %v1955 = vsub.f32 %v1323, %v1954
    %v1956 = vand.u32 %v1955, 4294901760
    %1957 = vmatpush.msra.mxu0 %v1956
    %v1958 = vand.u32 %v1321, 4294901760
    %v1959 = vsub.f32 %v1321, %v1958
    %v1960 = vand.u32 %v1959, 4294901760
    %1961 = vmatpush.msra.mxu0 %v1960
    %v1962 = vand.u32 %v1319, 4294901760
    %v1963 = vsub.f32 %v1319, %v1962
    %v1964 = vand.u32 %v1963, 4294901760
    %1965 = vmatpush.msra.mxu0 %v1964
    %v1966 = vand.u32 %v1317, 4294901760
    %v1967 = vsub.f32 %v1317, %v1966
    %v1968 = vand.u32 %v1967, 4294901760
    %1969 = vmatpush.msra.mxu0 %v1968
    %v1970 = vand.u32 %v1315, 4294901760
    %v1971 = vsub.f32 %v1315, %v1970
    %v1972 = vand.u32 %v1971, 4294901760
    %1973 = vmatpush.msra.mxu0 %v1972
    %v1974 = vand.u32 %v1313, 4294901760
    %v1975 = vsub.f32 %v1313, %v1974
    %v1976 = vand.u32 %v1975, 4294901760
    %1977 = vmatpush.msra.mxu0 %v1976
    %v1978 = vand.u32 %v1311, 4294901760
    %v1979 = vsub.f32 %v1311, %v1978
    %v1980 = vand.u32 %v1979, 4294901760
    %1981 = vmatpush.msra.mxu0 %v1980
    %v1982 = vand.u32 %v35, 4294901760
    %1983 = vmatmul.f32.gmra.mxu0 %v1982
    %v1984 = vpop.f32.mrf.mxu0
    %v1985 = vadd.f32 %v1916, %v1984
    %1986 = vdwg.mxu0
    %v1987 = vand.u32 %v1341, 4294901760
    %1988 = vmatpush.msra.mxu0 %v1987
    %v1989 = vand.u32 %v1339, 4294901760
    %1990 = vmatpush.msra.mxu0 %v1989
    %v1991 = vand.u32 %v1337, 4294901760
    %1992 = vmatpush.msra.mxu0 %v1991
    %v1993 = vand.u32 %v1335, 4294901760
    %1994 = vmatpush.msra.mxu0 %v1993
    %v1995 = vand.u32 %v1333, 4294901760
    %1996 = vmatpush.msra.mxu0 %v1995
    %v1997 = vand.u32 %v1331, 4294901760
    %1998 = vmatpush.msra.mxu0 %v1997
    %v1999 = vand.u32 %v1329, 4294901760
    %2000 = vmatpush.msra.mxu0 %v1999
    %v2001 = vand.u32 %v1327, 4294901760
    %2002 = vmatpush.msra.mxu0 %v2001
    %v2003 = vand.u32 %v1325, 4294901760
    %2004 = vmatpush.msra.mxu0 %v2003
    %v2005 = vand.u32 %v1323, 4294901760
    %2006 = vmatpush.msra.mxu0 %v2005
    %v2007 = vand.u32 %v1321, 4294901760
    %2008 = vmatpush.msra.mxu0 %v2007
    %v2009 = vand.u32 %v1319, 4294901760
    %2010 = vmatpush.msra.mxu0 %v2009
    %v2011 = vand.u32 %v1317, 4294901760
    %2012 = vmatpush.msra.mxu0 %v2011
    %v2013 = vand.u32 %v1315, 4294901760
    %2014 = vmatpush.msra.mxu0 %v2013
    %v2015 = vand.u32 %v1313, 4294901760
    %2016 = vmatpush.msra.mxu0 %v2015
    %v2017 = vand.u32 %v1311, 4294901760
    %2018 = vmatpush.msra.mxu0 %v2017
    %v2019 = vand.u32 %v35, 4294901760
    %2020 = vmatmul.f32.gmra.mxu0 %v2019
    %v2021 = vpop.f32.mrf.mxu0
    %v2022 = vadd.f32 %v1985, %v2021
    %2023 = vdwg.mxu0
    %v2024 = vstv %s36
    %v2025 = vadd.f32 %v1681, %v2024
    %v2026 = vadd.f32 %v2022, %v2024
    %v2029 = vrot.slane %v2026, 7
    %vm2030 = vcmask 1040384
    %v2031 = vsel %vm2030, %v2025, %v2029
    %v2033 = vlaneseq
    %vm2034 = vcmp.ge.s32.totalorder %v2033, 0
    %vm2035 = vcmp.lt.s32.totalorder %v2033, 256
    %vm2036 = vmand %vm2034, %vm2035
    %2037 = vst.msk [vmem:[#allocation3] sm:$0x3] %vm2036, %v2031
    // Predicated region
    $region18: #{tpu_custom_call.1} parent=1 // pred_check
      _
    $region19: #{tpu_custom_call.1} parent=1 // pred_check_branch
      %2039 = sbr.rel (0) target = $region21
    $region20: #{tpu_custom_call.1} parent=1 // pred_region
      %2041 = vsyncadd [#allocation4], 0
      %s2043 = sshll.u32 [#allocation3], 4
      %s2044 = int_to_ptr.vmem [resolvable:$true] %s2043
      %s2045 = sshll.u32 %s4, 4
      %s2046 = int_to_ptr.hbm [resolvable:$true] %s2045
      %2048 = dma.vmem_to_hbm [thread:$0]  %s2044, 32, %s2046, [#allocation4]
    $region21: #{tpu_custom_call.1} parent=1 // pred_fallthru
      _
    // Predicated region
    $region22: #{tpu_custom_call.1} parent=1 // pred_check
      _
    $region23: #{tpu_custom_call.1} parent=1 // pred_check_branch
      %2050 = sbr.rel (0) target = $region25
    $region24: #{tpu_custom_call.1} parent=1 // pred_region
      %2052 = dma.done [#allocation4], 32
    $region25: #{tpu_custom_call.1} parent=1 // pred_fallthru
      _
    %2053 = vsyncpa [#allocation4], 1

</llo_original>
